<compile_context>
chip_gen: v7x
topology: tpu7x:2x2x1
jax: 0.10.0
libtpu: 0.0.40
codegen_flags: <defaults>
</compile_context>

<pallas_src>
import jax
import jax.numpy as jnp
from jax.experimental import pallas as pl
from jax.experimental.pallas import tpu as pltpu


# ----------------------------------------------------------------------------
# Fused kernel builder: the whole CausalCNN stack in one kernel body.
# ----------------------------------------------------------------------------
def _build_fused_kernel(meta, *, T, B_tile, C_pad, pad_max, n_wrefs, mxu_dtype,
                        negative_slope=0.01):
    """meta: tuple of (shifts, cin_orig, has_downsample) per block (all static)."""

    def kernel(*args):
        # args = (x_ref, *weight_refs, o_ref, pad_scratch)
        x_ref = args[0]
        o_ref = args[1 + n_wrefs]
        pad_ref = args[2 + n_wrefs]

        # Zero the causal-padding prefix (sublane-aligned, tiny); conv stores only
        # ever touch rows >= pad_max so it stays zero for the whole body.
        if pad_max > 0:
            pad_ref[:, :pad_max, :] = jnp.zeros((B_tile, pad_max, C_pad), jnp.float32)

        def lrelu(v):
            # exact LeakyReLU for 0 < slope < 1, single VPU max (f32)
            return jnp.maximum(v, negative_slope * v)

        def mxu(a3, w, depth):
            # a3: (B_tile, T, depth) f32 -> cast operands to mxu_dtype, accumulate f32
            r = jnp.dot(a3.reshape(B_tile * T, depth).astype(mxu_dtype), w,
                        preferred_element_type=jnp.float32)
            return r.reshape(B_tile, T, C_pad)

        def causal_conv(act, w_ref, b_ref, shifts, cin_is_one):
            # y[t] = sum_j W_j @ act[t - shifts[j]]   (zeros for t < 0)
            # Shifted windows come from the zero-prefixed scratch; shift==0 reuses `act`.
            if any(s > 0 for s in shifts):
                pad_ref[:, pad_max:pad_max + T, :] = act
            if cin_is_one:
                # depth-1 contraction per tap: broadcast MAC on the VPU (f32), skip the MXU
                acc = None
                for j, s in enumerate(shifts):
                    xs = act if s == 0 else pad_ref[:, pad_max - s:pad_max - s + T, :]
                    w_row = w_ref[j * C_pad:j * C_pad + 1, :].astype(jnp.float32)
                    contrib = xs[:, :, 0:1] * w_row
                    acc = contrib if acc is None else acc + contrib
                return acc + b_ref[0:1, :]
            # Fold all taps into ONE contraction of depth len(shifts)*C_pad (256 for K=2).
            windows = [act if s == 0 else pad_ref[:, pad_max - s:pad_max - s + T, :]
                       for s in shifts]
            op = windows[0] if len(windows) == 1 else jnp.concatenate(windows, axis=-1)
            return mxu(op, w_ref[...], len(shifts) * C_pad) + b_ref[0:1, :]

        act = x_ref[...].astype(jnp.float32)  # (B_tile, T, C_pad); lanes >= Cin are zero
        off = 1
        for (shifts, cin_orig, has_ds) in meta:
            w1_ref, b1_ref, w2_ref, b2_ref = args[off:off + 4]
            off += 4
            h = lrelu(causal_conv(act, w1_ref, b1_ref, shifts, cin_orig == 1))
            h = lrelu(causal_conv(h, w2_ref, b2_ref, shifts, False))
            if has_ds:
                wres_ref, bres_ref = args[off:off + 2]
                off += 2
                if cin_orig == 1:
                    res = act[:, :, 0:1] * wres_ref[0:1, :].astype(jnp.float32) \
                        + bres_ref[0:1, :]
                else:
                    res = mxu(act, wres_ref[...], C_pad) + bres_ref[0:1, :]
            else:
                res = act  # identity skip: plain add, no eye-matmul
            act = h + res

        # Lane-dense store of the full 128-lane slab (padded lanes are exactly zero);
        # the wrapper slices back to the real output width.
        o_ref[...] = act.astype(o_ref.dtype)

    return kernel


# ----------------------------------------------------------------------------
# Wrapper: pad channels/batch, pack tap weights, one pallas_call for the stack.
# ----------------------------------------------------------------------------
def tcn_support_set_encoder_forward(sequences, blocks, kernel_size, *,
                                    batch_tile=None, c_pad=128,
                                    mxu_dtype=jnp.bfloat16,
                                    vmem_limit_bytes=48 * 1024 * 1024):
    """sequences: [B, T, n_features] -> [B, T, out_channels]."""
    B, T, c_in0 = sequences.shape
    K = kernel_size
    C_out = blocks[-1][2].shape[-1]  # last block's w2: (K, cout, cout)

    # Causal-padding prefix length, rounded UP to 8 sublanes (aligned scratch stores).
    pad_raw = max((K - 1) * blk[-1] for blk in blocks)
    pad_max = ((pad_raw + 7) // 8) * 8 if pad_raw > 0 else 0

    # ---- auto batch tile: fill the MXU M-dim, stay inside a conservative VMEM budget
    #      (v7x 64 MiB physical is the binding generation).
    if batch_tile is None:
        bt = max(1, -(-256 // T))                    # target M = batch_tile*T >= 256
        bt = min(bt, max(1, B))                      # don't pad far past the real batch
        per_bt_bytes = 10 * T * c_pad * 4            # ~10 live f32 activation-sized buffers
        bt = max(1, min(bt, (20 * 1024 * 1024) // per_bt_bytes))
        batch_tile = bt

    n_steps = pl.cdiv(B, batch_tile)
    B_pad = n_steps * batch_tile

    # Lane-dense, zero-padded input (channels -> 128 lanes; batch -> tile multiple).
    x = jnp.pad(sequences.astype(jnp.float32),
                ((0, B_pad - B), (0, 0), (0, c_pad - c_in0)))

    # Pack per-block weights: taps folded along rows -> (n_taps*c_pad, c_pad) in mxu_dtype.
    meta, flat_params = [], []
    for (w1, b1, w2, b2, wres, bres, dilation) in blocks:
        cin, cout = w1.shape[1], w1.shape[2]
        assert cin <= c_pad and cout <= c_pad
        taps_k = [(k, (K - 1 - k) * dilation) for k in range(K)]
        taps_k = [(k, s) for (k, s) in taps_k if s < T]   # drop taps fully in the zero prefix
        shifts = tuple(s for _, s in taps_k)

        def pack_taps(w):
            wp = jnp.pad(w, ((0, 0), (0, c_pad - w.shape[1]), (0, c_pad - w.shape[2])))
            return jnp.concatenate([wp[k] for (k, _) in taps_k], axis=0).astype(mxu_dtype)

        def pad_b(b):
            return jnp.pad(b, ((0, 0), (0, c_pad - b.shape[1]))).astype(jnp.float32)

        flat_params += [pack_taps(w1), pad_b(b1), pack_taps(w2), pad_b(b2)]
        has_ds = wres is not None
        if has_ds:
            flat_params += [
                jnp.pad(wres, ((0, c_pad - cin), (0, c_pad - cout))).astype(mxu_dtype),
                pad_b(bres),
            ]
        meta.append((shifts, cin, has_ds))
    n_wrefs = len(flat_params)

    kernel = _build_fused_kernel(tuple(meta), T=T, B_tile=batch_tile, C_pad=c_pad,
                                 pad_max=pad_max, n_wrefs=n_wrefs, mxu_dtype=mxu_dtype)

    def full_spec(shape):
        nd = len(shape)
        return pl.BlockSpec(shape, lambda g, _nd=nd: (0,) * _nd)  # constant -> no re-DMA

    in_specs = [pl.BlockSpec((batch_tile, T, c_pad), lambda g: (g, 0, 0))]
    in_specs += [full_spec(p.shape) for p in flat_params]

    # Advisory cost estimate for XLA scheduling around the custom call.
    flops = 0
    for (shifts, cin, has_ds) in meta:
        depth = len(shifts) * c_pad
        if cin == 1:
            flops += 2 * B_pad * T * len(shifts) * c_pad       # conv1 as VPU MAC
        else:
            flops += 2 * B_pad * T * depth * c_pad             # conv1 on MXU
        flops += 2 * B_pad * T * depth * c_pad                 # conv2 on MXU
        if has_ds:
            flops += 2 * B_pad * T * c_pad * (1 if cin == 1 else c_pad)
    bytes_accessed = int(x.size) * 4 + B_pad * T * c_pad * 4 \
        + sum(int(p.size) * p.dtype.itemsize for p in flat_params)

    out = pl.pallas_call(
        kernel,
        out_shape=jax.ShapeDtypeStruct((B_pad, T, c_pad), sequences.dtype),
        grid=(n_steps,),
        in_specs=in_specs,
        out_specs=pl.BlockSpec((batch_tile, T, c_pad), lambda g: (g, 0, 0)),
        scratch_shapes=[pltpu.VMEM((batch_tile, pad_max + T, c_pad), jnp.float32)],
        compiler_params=pltpu.CompilerParams(
            dimension_semantics=("parallel",),
            vmem_limit_bytes=vmem_limit_bytes),
        cost_estimate=pl.CostEstimate(flops=int(flops), transcendentals=0,
                                      bytes_accessed=int(bytes_accessed)),
    )(x, *flat_params)
    return out[:B, :, :C_out]


# ----------------------------------------------------------------------------
# Parameter init (deterministic, synthetic). Identity residual blocks carry wres=None.
# ----------------------------------------------------------------------------
def init_params(key, in_channels, channels, depth, out_channels, kernel_size):
    blocks = []
    dilation = 1
    cin = in_channels
    for i in range(depth + 1):
        cout = channels if i < depth else out_channels
        key, k0, k1, k2, k3, k4, k5 = jax.random.split(key, 7)
        w1 = 0.2 * jax.random.normal(k0, (kernel_size, cin, cout), jnp.float32)
        b1 = 0.1 * jax.random.normal(k1, (1, cout), jnp.float32)
        w2 = 0.2 * jax.random.normal(k2, (kernel_size, cout, cout), jnp.float32)
        b2 = 0.1 * jax.random.normal(k3, (1, cout), jnp.float32)
        if cin != cout:
            wres = 0.2 * jax.random.normal(k4, (cin, cout), jnp.float32)
            bres = 0.1 * jax.random.normal(k5, (1, cout), jnp.float32)
        else:
            wres, bres = None, None  # identity residual -> plain add in the kernel
        blocks.append((w1, b1, w2, b2, wres, bres, dilation))
        cin = cout
        dilation *= 2
    return blocks


# ----------------------------------------------------------------------------
# Pure-JAX reference (lax.conv_general_dilated) for correctness check
# ----------------------------------------------------------------------------
def _ref_causal_conv(x, w, b, dilation):
    K = w.shape[0]
    pad = (K - 1) * dilation
    y = jax.lax.conv_general_dilated(
        x, w, window_strides=(1,), padding=[(pad, 0)], rhs_dilation=(dilation,),
        dimension_numbers=("NWC", "WIO", "NWC"),
    )
    return y + b[0]


def ref_forward(sequences, blocks):
    def lrelu(v):
        return jnp.where(v > 0, v, 0.01 * v)

    x = sequences
    for (w1, b1, w2, b2, wres, bres, dilation) in blocks:
        h = lrelu(_ref_causal_conv(x, w1, b1, dilation))
        h = lrelu(_ref_causal_conv(h, w2, b2, dilation))
        res = x if wres is None else jnp.einsum("btc,cd->btd", x, wres) + bres[0]
        x = h + res
    return x


# ----------------------------------------------------------------------------
if __name__ == "__main__":
    # Small, module-consistent shapes: support-set series [batch, seq_len, 1].
    B, T = 2, 16
    num_channels, num_layers, kernel_size = 32, 3, 2

    key = jax.random.PRNGKey(0)
    kx, kp = jax.random.split(key)
    sequences = jax.random.normal(kx, (B, T, 1), jnp.float32)
    blocks = init_params(kp, 1, num_channels, num_layers, num_channels, kernel_size)

    ref = ref_forward(sequences, blocks)

    # 1) exact-math path (f32 MXU operands) — strict validation of the fused structure.
    out_f32 = tcn_support_set_encoder_forward(sequences, blocks, kernel_size,
                                              mxu_dtype=jnp.float32)
    out_f32 = jax.block_until_ready(out_f32)
    assert out_f32.shape == (B, T, num_channels), out_f32.shape
    assert jnp.allclose(out_f32, ref, atol=1e-4, rtol=1e-4), \
        float(jnp.max(jnp.abs(out_f32 - ref)))

    # 2) fast path (bf16 MXU operands, f32 accumulation & elementwise) — loose validation.
    out_bf = tcn_support_set_encoder_forward(sequences, blocks, kernel_size)
    out_bf = jax.block_until_ready(out_bf)
    assert out_bf.shape == (B, T, num_channels), out_bf.shape
    err = float(jnp.max(jnp.abs(out_bf - ref)))
    scale = float(jnp.max(jnp.abs(ref)))
    assert err <= 5e-2 * scale + 1e-2, (err, scale)

    print("KERNEL_OK")
</pallas_src>

<mosaic_0001>
module attributes {stable_mosaic.version = 11 : i64} {
  func.func @kernel(%arg0: i32, %arg1: memref<2x16x128xf32, #tpu.memory_space<vmem>>, %arg2: memref<256x128xf32, #tpu.memory_space<vmem>>, %arg3: memref<1x128xf32, #tpu.memory_space<vmem>>, %arg4: memref<256x128xf32, #tpu.memory_space<vmem>>, %arg5: memref<1x128xf32, #tpu.memory_space<vmem>>, %arg6: memref<128x128xf32, #tpu.memory_space<vmem>>, %arg7: memref<1x128xf32, #tpu.memory_space<vmem>>, %arg8: memref<256x128xf32, #tpu.memory_space<vmem>>, %arg9: memref<1x128xf32, #tpu.memory_space<vmem>>, %arg10: memref<256x128xf32, #tpu.memory_space<vmem>>, %arg11: memref<1x128xf32, #tpu.memory_space<vmem>>, %arg12: memref<256x128xf32, #tpu.memory_space<vmem>>, %arg13: memref<1x128xf32, #tpu.memory_space<vmem>>, %arg14: memref<256x128xf32, #tpu.memory_space<vmem>>, %arg15: memref<1x128xf32, #tpu.memory_space<vmem>>, %arg16: memref<256x128xf32, #tpu.memory_space<vmem>>, %arg17: memref<1x128xf32, #tpu.memory_space<vmem>>, %arg18: memref<256x128xf32, #tpu.memory_space<vmem>>, %arg19: memref<1x128xf32, #tpu.memory_space<vmem>>, %arg20: memref<2x16x128xf32, #tpu.memory_space<vmem>>, %arg21: memref<2x24x128xf32, #tpu.memory_space<vmem>>) attributes {dimension_semantics = [#tpu.dimension_semantics<parallel>], iteration_bounds = array<i64: 1>, scalar_prefetch = 0 : i64, scratch_operands = 1 : i64, tpu.core_type = #tpu.core_type<tc>, window_params = [{transform_indices = @transform_0, window_bounds = array<i64: 2, 16, 128>}, {pipeline_mode = #tpu.pipeline_mode<synchronous>, transform_indices = @transform_1, window_bounds = array<i64: 256, 128>}, {pipeline_mode = #tpu.pipeline_mode<synchronous>, transform_indices = @transform_2, window_bounds = array<i64: 1, 128>}, {pipeline_mode = #tpu.pipeline_mode<synchronous>, transform_indices = @transform_3, window_bounds = array<i64: 256, 128>}, {pipeline_mode = #tpu.pipeline_mode<synchronous>, transform_indices = @transform_4, window_bounds = array<i64: 1, 128>}, {pipeline_mode = #tpu.pipeline_mode<synchronous>, transform_indices = @transform_5, window_bounds = array<i64: 128, 128>}, {pipeline_mode = #tpu.pipeline_mode<synchronous>, transform_indices = @transform_6, window_bounds = array<i64: 1, 128>}, {pipeline_mode = #tpu.pipeline_mode<synchronous>, transform_indices = @transform_7, window_bounds = array<i64: 256, 128>}, {pipeline_mode = #tpu.pipeline_mode<synchronous>, transform_indices = @transform_8, window_bounds = array<i64: 1, 128>}, {pipeline_mode = #tpu.pipeline_mode<synchronous>, transform_indices = @transform_9, window_bounds = array<i64: 256, 128>}, {pipeline_mode = #tpu.pipeline_mode<synchronous>, transform_indices = @transform_10, window_bounds = array<i64: 1, 128>}, {pipeline_mode = #tpu.pipeline_mode<synchronous>, transform_indices = @transform_11, window_bounds = array<i64: 256, 128>}, {pipeline_mode = #tpu.pipeline_mode<synchronous>, transform_indices = @transform_12, window_bounds = array<i64: 1, 128>}, {pipeline_mode = #tpu.pipeline_mode<synchronous>, transform_indices = @transform_13, window_bounds = array<i64: 256, 128>}, {pipeline_mode = #tpu.pipeline_mode<synchronous>, transform_indices = @transform_14, window_bounds = array<i64: 1, 128>}, {pipeline_mode = #tpu.pipeline_mode<synchronous>, transform_indices = @transform_15, window_bounds = array<i64: 256, 128>}, {pipeline_mode = #tpu.pipeline_mode<synchronous>, transform_indices = @transform_16, window_bounds = array<i64: 1, 128>}, {pipeline_mode = #tpu.pipeline_mode<synchronous>, transform_indices = @transform_17, window_bounds = array<i64: 256, 128>}, {pipeline_mode = #tpu.pipeline_mode<synchronous>, transform_indices = @transform_18, window_bounds = array<i64: 1, 128>}, {transform_indices = @transform_19, window_bounds = array<i64: 2, 16, 128>}]} {
    %cst = arith.constant 0.000000e+00 : f32
    %0 = vector.broadcast %cst : f32 to vector<2x8x128xf32>
    %c0 = arith.constant 0 : index
    %c0_0 = arith.constant 0 : index
    %c0_1 = arith.constant 0 : index
    %1 = vector.load %arg21[%c0, %c0_0, %c0_1] : memref<2x24x128xf32, #tpu.memory_space<vmem>>, vector<2x8x128xf32>
    tpu.vector_store %arg21[%c0, %c0_0, %c0_1], %0 {strides = array<i32>} : memref<2x24x128xf32, #tpu.memory_space<vmem>>, vector<2x8x128xf32>,
    %c0_2 = arith.constant 0 : index
    %c0_3 = arith.constant 0 : index
    %c0_4 = arith.constant 0 : index
    %2 = vector.load %arg1[%c0_2, %c0_3, %c0_4] : memref<2x16x128xf32, #tpu.memory_space<vmem>>, vector<2x16x128xf32>
    %c0_5 = arith.constant 0 : index
    %c8 = arith.constant 8 : index
    %c0_6 = arith.constant 0 : index
    %3 = vector.load %arg21[%c0_5, %c8, %c0_6] : memref<2x24x128xf32, #tpu.memory_space<vmem>>, vector<2x16x128xf32>
    tpu.vector_store %arg21[%c0_5, %c8, %c0_6], %2 {strides = array<i32>} : memref<2x24x128xf32, #tpu.memory_space<vmem>>, vector<2x16x128xf32>,
    %c0_7 = arith.constant 0 : index
    %c7 = arith.constant 7 : index
    %c0_8 = arith.constant 0 : index
    %4 = vector.load %arg21[%c0_7, %c7, %c0_8] : memref<2x24x128xf32, #tpu.memory_space<vmem>>, vector<2x16x128xf32>
    %c0_9 = arith.constant 0 : index
    %c0_10 = arith.constant 0 : index
    %5 = vector.load %arg2[%c0_9, %c0_10] : memref<256x128xf32, #tpu.memory_space<vmem>>, vector<1x128xf32>
    %6 = vector.extract_strided_slice %4 {offsets = [0, 0, 0], sizes = [2, 16, 1], strides = [1, 1, 1]} : vector<2x16x128xf32> to vector<2x16x1xf32>
    %7 = vector.shape_cast %5 : vector<1x128xf32> to vector<1x1x128xf32>
    %8 = vector.broadcast %6 : vector<2x16x1xf32> to vector<2x16x128xf32>
    %9 = vector.broadcast %7 : vector<1x1x128xf32> to vector<2x16x128xf32>
    %10 = arith.mulf %8, %9 : vector<2x16x128xf32>
    %c128 = arith.constant 128 : index
    %c0_11 = arith.constant 0 : index
    %11 = vector.load %arg2[%c128, %c0_11] : memref<256x128xf32, #tpu.memory_space<vmem>>, vector<1x128xf32>
    %12 = vector.extract_strided_slice %2 {offsets = [0, 0, 0], sizes = [2, 16, 1], strides = [1, 1, 1]} : vector<2x16x128xf32> to vector<2x16x1xf32>
    %13 = vector.shape_cast %11 : vector<1x128xf32> to vector<1x1x128xf32>
    %14 = vector.broadcast %12 : vector<2x16x1xf32> to vector<2x16x128xf32>
    %15 = vector.broadcast %13 : vector<1x1x128xf32> to vector<2x16x128xf32>
    %16 = arith.mulf %14, %15 : vector<2x16x128xf32>
    %17 = arith.addf %10, %16 : vector<2x16x128xf32>
    %c0_12 = arith.constant 0 : index
    %c0_13 = arith.constant 0 : index
    %18 = vector.load %arg3[%c0_12, %c0_13] : memref<1x128xf32, #tpu.memory_space<vmem>>, vector<1x128xf32>
    %19 = vector.shape_cast %18 : vector<1x128xf32> to vector<1x1x128xf32>
    %20 = vector.broadcast %19 : vector<1x1x128xf32> to vector<2x16x128xf32>
    %21 = arith.addf %17, %20 : vector<2x16x128xf32>
    %cst_14 = arith.constant 0.00999999977 : f32
    %22 = vector.broadcast %cst_14 : f32 to vector<2x16x128xf32>
    %23 = arith.mulf %22, %21 : vector<2x16x128xf32>
    %24 = arith.maximumf %21, %23 : vector<2x16x128xf32>
    %c0_15 = arith.constant 0 : index
    %c8_16 = arith.constant 8 : index
    %c0_17 = arith.constant 0 : index
    %25 = vector.load %arg21[%c0_15, %c8_16, %c0_17] : memref<2x24x128xf32, #tpu.memory_space<vmem>>, vector<2x16x128xf32>
    tpu.vector_store %arg21[%c0_15, %c8_16, %c0_17], %24 {strides = array<i32>} : memref<2x24x128xf32, #tpu.memory_space<vmem>>, vector<2x16x128xf32>,
    %c0_18 = arith.constant 0 : index
    %c7_19 = arith.constant 7 : index
    %c0_20 = arith.constant 0 : index
    %26 = vector.load %arg21[%c0_18, %c7_19, %c0_20] : memref<2x24x128xf32, #tpu.memory_space<vmem>>, vector<2x16x128xf32>
    %27 = tpu.concatenate %26, %24 in 2 : vector<2x16x128xf32>, vector<2x16x128xf32> -> vector<2x16x256xf32>
    %c0_21 = arith.constant 0 : index
    %c0_22 = arith.constant 0 : index
    %28 = vector.load %arg4[%c0_21, %c0_22] : memref<256x128xf32, #tpu.memory_space<vmem>>, vector<256x128xf32>
    %29 = vector.shape_cast %27 : vector<2x16x256xf32> to vector<32x256xf32>
    %cst_23 = arith.constant dense<0.000000e+00> : vector<32x128xf32>
    %30 = tpu.matmul %29, %28, %cst_23 {dimension_numbers = #tpu.dot_dimension_numbers<[1], [0], [0], [1], [0, 0, 1, 1], [], []>} : vector<32x256xf32>, vector<256x128xf32>, vector<32x128xf32> -> vector<32x128xf32>
    %31 = vector.shape_cast %30 : vector<32x128xf32> to vector<2x16x128xf32>
    %c0_24 = arith.constant 0 : index
    %c0_25 = arith.constant 0 : index
    %32 = vector.load %arg5[%c0_24, %c0_25] : memref<1x128xf32, #tpu.memory_space<vmem>>, vector<1x128xf32>
    %33 = vector.shape_cast %32 : vector<1x128xf32> to vector<1x1x128xf32>
    %34 = vector.broadcast %33 : vector<1x1x128xf32> to vector<2x16x128xf32>
    %35 = arith.addf %31, %34 : vector<2x16x128xf32>
    %cst_26 = arith.constant 0.00999999977 : f32
    %36 = vector.broadcast %cst_26 : f32 to vector<2x16x128xf32>
    %37 = arith.mulf %36, %35 : vector<2x16x128xf32>
    %38 = arith.maximumf %35, %37 : vector<2x16x128xf32>
    %39 = vector.extract_strided_slice %2 {offsets = [0, 0, 0], sizes = [2, 16, 1], strides = [1, 1, 1]} : vector<2x16x128xf32> to vector<2x16x1xf32>
    %c0_27 = arith.constant 0 : index
    %c0_28 = arith.constant 0 : index
    %40 = vector.load %arg6[%c0_27, %c0_28] : memref<128x128xf32, #tpu.memory_space<vmem>>, vector<1x128xf32>
    %41 = vector.shape_cast %40 : vector<1x128xf32> to vector<1x1x128xf32>
    %42 = vector.broadcast %39 : vector<2x16x1xf32> to vector<2x16x128xf32>
    %43 = vector.broadcast %41 : vector<1x1x128xf32> to vector<2x16x128xf32>
    %44 = arith.mulf %42, %43 : vector<2x16x128xf32>
    %c0_29 = arith.constant 0 : index
    %c0_30 = arith.constant 0 : index
    %45 = vector.load %arg7[%c0_29, %c0_30] : memref<1x128xf32, #tpu.memory_space<vmem>>, vector<1x128xf32>
    %46 = vector.shape_cast %45 : vector<1x128xf32> to vector<1x1x128xf32>
    %47 = vector.broadcast %46 : vector<1x1x128xf32> to vector<2x16x128xf32>
    %48 = arith.addf %44, %47 : vector<2x16x128xf32>
    %49 = arith.addf %38, %48 : vector<2x16x128xf32>
    %c0_31 = arith.constant 0 : index
    %c8_32 = arith.constant 8 : index
    %c0_33 = arith.constant 0 : index
    %50 = vector.load %arg21[%c0_31, %c8_32, %c0_33] : memref<2x24x128xf32, #tpu.memory_space<vmem>>, vector<2x16x128xf32>
    tpu.vector_store %arg21[%c0_31, %c8_32, %c0_33], %49 {strides = array<i32>} : memref<2x24x128xf32, #tpu.memory_space<vmem>>, vector<2x16x128xf32>,
    %c0_34 = arith.constant 0 : index
    %c6 = arith.constant 6 : index
    %c0_35 = arith.constant 0 : index
    %51 = vector.load %arg21[%c0_34, %c6, %c0_35] : memref<2x24x128xf32, #tpu.memory_space<vmem>>, vector<2x16x128xf32>
    %52 = tpu.concatenate %51, %49 in 2 : vector<2x16x128xf32>, vector<2x16x128xf32> -> vector<2x16x256xf32>
    %c0_36 = arith.constant 0 : index
    %c0_37 = arith.constant 0 : index
    %53 = vector.load %arg8[%c0_36, %c0_37] : memref<256x128xf32, #tpu.memory_space<vmem>>, vector<256x128xf32>
    %54 = vector.shape_cast %52 : vector<2x16x256xf32> to vector<32x256xf32>
    %cst_38 = arith.constant dense<0.000000e+00> : vector<32x128xf32>
    %55 = tpu.matmul %54, %53, %cst_38 {dimension_numbers = #tpu.dot_dimension_numbers<[1], [0], [0], [1], [0, 0, 1, 1], [], []>} : vector<32x256xf32>, vector<256x128xf32>, vector<32x128xf32> -> vector<32x128xf32>
    %56 = vector.shape_cast %55 : vector<32x128xf32> to vector<2x16x128xf32>
    %c0_39 = arith.constant 0 : index
    %c0_40 = arith.constant 0 : index
    %57 = vector.load %arg9[%c0_39, %c0_40] : memref<1x128xf32, #tpu.memory_space<vmem>>, vector<1x128xf32>
    %58 = vector.shape_cast %57 : vector<1x128xf32> to vector<1x1x128xf32>
    %59 = vector.broadcast %58 : vector<1x1x128xf32> to vector<2x16x128xf32>
    %60 = arith.addf %56, %59 : vector<2x16x128xf32>
    %cst_41 = arith.constant 0.00999999977 : f32
    %61 = vector.broadcast %cst_41 : f32 to vector<2x16x128xf32>
    %62 = arith.mulf %61, %60 : vector<2x16x128xf32>
    %63 = arith.maximumf %60, %62 : vector<2x16x128xf32>
    %c0_42 = arith.constant 0 : index
    %c8_43 = arith.constant 8 : index
    %c0_44 = arith.constant 0 : index
    %64 = vector.load %arg21[%c0_42, %c8_43, %c0_44] : memref<2x24x128xf32, #tpu.memory_space<vmem>>, vector<2x16x128xf32>
    tpu.vector_store %arg21[%c0_42, %c8_43, %c0_44], %63 {strides = array<i32>} : memref<2x24x128xf32, #tpu.memory_space<vmem>>, vector<2x16x128xf32>,
    %c0_45 = arith.constant 0 : index
    %c6_46 = arith.constant 6 : index
    %c0_47 = arith.constant 0 : index
    %65 = vector.load %arg21[%c0_45, %c6_46, %c0_47] : memref<2x24x128xf32, #tpu.memory_space<vmem>>, vector<2x16x128xf32>
    %66 = tpu.concatenate %65, %63 in 2 : vector<2x16x128xf32>, vector<2x16x128xf32> -> vector<2x16x256xf32>
    %c0_48 = arith.constant 0 : index
    %c0_49 = arith.constant 0 : index
    %67 = vector.load %arg10[%c0_48, %c0_49] : memref<256x128xf32, #tpu.memory_space<vmem>>, vector<256x128xf32>
    %68 = vector.shape_cast %66 : vector<2x16x256xf32> to vector<32x256xf32>
    %cst_50 = arith.constant dense<0.000000e+00> : vector<32x128xf32>
    %69 = tpu.matmul %68, %67, %cst_50 {dimension_numbers = #tpu.dot_dimension_numbers<[1], [0], [0], [1], [0, 0, 1, 1], [], []>} : vector<32x256xf32>, vector<256x128xf32>, vector<32x128xf32> -> vector<32x128xf32>
    %70 = vector.shape_cast %69 : vector<32x128xf32> to vector<2x16x128xf32>
    %c0_51 = arith.constant 0 : index
    %c0_52 = arith.constant 0 : index
    %71 = vector.load %arg11[%c0_51, %c0_52] : memref<1x128xf32, #tpu.memory_space<vmem>>, vector<1x128xf32>
    %72 = vector.shape_cast %71 : vector<1x128xf32> to vector<1x1x128xf32>
    %73 = vector.broadcast %72 : vector<1x1x128xf32> to vector<2x16x128xf32>
    %74 = arith.addf %70, %73 : vector<2x16x128xf32>
    %cst_53 = arith.constant 0.00999999977 : f32
    %75 = vector.broadcast %cst_53 : f32 to vector<2x16x128xf32>
    %76 = arith.mulf %75, %74 : vector<2x16x128xf32>
    %77 = arith.maximumf %74, %76 : vector<2x16x128xf32>
    %78 = arith.addf %77, %49 : vector<2x16x128xf32>
    %c0_54 = arith.constant 0 : index
    %c8_55 = arith.constant 8 : index
    %c0_56 = arith.constant 0 : index
    %79 = vector.load %arg21[%c0_54, %c8_55, %c0_56] : memref<2x24x128xf32, #tpu.memory_space<vmem>>, vector<2x16x128xf32>
    tpu.vector_store %arg21[%c0_54, %c8_55, %c0_56], %78 {strides = array<i32>} : memref<2x24x128xf32, #tpu.memory_space<vmem>>, vector<2x16x128xf32>,
    %c0_57 = arith.constant 0 : index
    %c4 = arith.constant 4 : index
    %c0_58 = arith.constant 0 : index
    %80 = vector.load %arg21[%c0_57, %c4, %c0_58] : memref<2x24x128xf32, #tpu.memory_space<vmem>>, vector<2x16x128xf32>
    %81 = tpu.concatenate %80, %78 in 2 : vector<2x16x128xf32>, vector<2x16x128xf32> -> vector<2x16x256xf32>
    %c0_59 = arith.constant 0 : index
    %c0_60 = arith.constant 0 : index
    %82 = vector.load %arg12[%c0_59, %c0_60] : memref<256x128xf32, #tpu.memory_space<vmem>>, vector<256x128xf32>
    %83 = vector.shape_cast %81 : vector<2x16x256xf32> to vector<32x256xf32>
    %cst_61 = arith.constant dense<0.000000e+00> : vector<32x128xf32>
    %84 = tpu.matmul %83, %82, %cst_61 {dimension_numbers = #tpu.dot_dimension_numbers<[1], [0], [0], [1], [0, 0, 1, 1], [], []>} : vector<32x256xf32>, vector<256x128xf32>, vector<32x128xf32> -> vector<32x128xf32>
    %85 = vector.shape_cast %84 : vector<32x128xf32> to vector<2x16x128xf32>
    %c0_62 = arith.constant 0 : index
    %c0_63 = arith.constant 0 : index
    %86 = vector.load %arg13[%c0_62, %c0_63] : memref<1x128xf32, #tpu.memory_space<vmem>>, vector<1x128xf32>
    %87 = vector.shape_cast %86 : vector<1x128xf32> to vector<1x1x128xf32>
    %88 = vector.broadcast %87 : vector<1x1x128xf32> to vector<2x16x128xf32>
    %89 = arith.addf %85, %88 : vector<2x16x128xf32>
    %cst_64 = arith.constant 0.00999999977 : f32
    %90 = vector.broadcast %cst_64 : f32 to vector<2x16x128xf32>
    %91 = arith.mulf %90, %89 : vector<2x16x128xf32>
    %92 = arith.maximumf %89, %91 : vector<2x16x128xf32>
    %c0_65 = arith.constant 0 : index
    %c8_66 = arith.constant 8 : index
    %c0_67 = arith.constant 0 : index
    %93 = vector.load %arg21[%c0_65, %c8_66, %c0_67] : memref<2x24x128xf32, #tpu.memory_space<vmem>>, vector<2x16x128xf32>
    tpu.vector_store %arg21[%c0_65, %c8_66, %c0_67], %92 {strides = array<i32>} : memref<2x24x128xf32, #tpu.memory_space<vmem>>, vector<2x16x128xf32>,
    %c0_68 = arith.constant 0 : index
    %c4_69 = arith.constant 4 : index
    %c0_70 = arith.constant 0 : index
    %94 = vector.load %arg21[%c0_68, %c4_69, %c0_70] : memref<2x24x128xf32, #tpu.memory_space<vmem>>, vector<2x16x128xf32>
    %95 = tpu.concatenate %94, %92 in 2 : vector<2x16x128xf32>, vector<2x16x128xf32> -> vector<2x16x256xf32>
    %c0_71 = arith.constant 0 : index
    %c0_72 = arith.constant 0 : index
    %96 = vector.load %arg14[%c0_71, %c0_72] : memref<256x128xf32, #tpu.memory_space<vmem>>, vector<256x128xf32>
    %97 = vector.shape_cast %95 : vector<2x16x256xf32> to vector<32x256xf32>
    %cst_73 = arith.constant dense<0.000000e+00> : vector<32x128xf32>
    %98 = tpu.matmul %97, %96, %cst_73 {dimension_numbers = #tpu.dot_dimension_numbers<[1], [0], [0], [1], [0, 0, 1, 1], [], []>} : vector<32x256xf32>, vector<256x128xf32>, vector<32x128xf32> -> vector<32x128xf32>
    %99 = vector.shape_cast %98 : vector<32x128xf32> to vector<2x16x128xf32>
    %c0_74 = arith.constant 0 : index
    %c0_75 = arith.constant 0 : index
    %100 = vector.load %arg15[%c0_74, %c0_75] : memref<1x128xf32, #tpu.memory_space<vmem>>, vector<1x128xf32>
    %101 = vector.shape_cast %100 : vector<1x128xf32> to vector<1x1x128xf32>
    %102 = vector.broadcast %101 : vector<1x1x128xf32> to vector<2x16x128xf32>
    %103 = arith.addf %99, %102 : vector<2x16x128xf32>
    %cst_76 = arith.constant 0.00999999977 : f32
    %104 = vector.broadcast %cst_76 : f32 to vector<2x16x128xf32>
    %105 = arith.mulf %104, %103 : vector<2x16x128xf32>
    %106 = arith.maximumf %103, %105 : vector<2x16x128xf32>
    %107 = arith.addf %106, %78 : vector<2x16x128xf32>
    %c0_77 = arith.constant 0 : index
    %c8_78 = arith.constant 8 : index
    %c0_79 = arith.constant 0 : index
    %108 = vector.load %arg21[%c0_77, %c8_78, %c0_79] : memref<2x24x128xf32, #tpu.memory_space<vmem>>, vector<2x16x128xf32>
    tpu.vector_store %arg21[%c0_77, %c8_78, %c0_79], %107 {strides = array<i32>} : memref<2x24x128xf32, #tpu.memory_space<vmem>>, vector<2x16x128xf32>,
    %c0_80 = arith.constant 0 : index
    %c0_81 = arith.constant 0 : index
    %c0_82 = arith.constant 0 : index
    %109 = vector.load %arg21[%c0_80, %c0_81, %c0_82] : memref<2x24x128xf32, #tpu.memory_space<vmem>>, vector<2x16x128xf32>
    %110 = tpu.concatenate %109, %107 in 2 : vector<2x16x128xf32>, vector<2x16x128xf32> -> vector<2x16x256xf32>
    %c0_83 = arith.constant 0 : index
    %c0_84 = arith.constant 0 : index
    %111 = vector.load %arg16[%c0_83, %c0_84] : memref<256x128xf32, #tpu.memory_space<vmem>>, vector<256x128xf32>
    %112 = vector.shape_cast %110 : vector<2x16x256xf32> to vector<32x256xf32>
    %cst_85 = arith.constant dense<0.000000e+00> : vector<32x128xf32>
    %113 = tpu.matmul %112, %111, %cst_85 {dimension_numbers = #tpu.dot_dimension_numbers<[1], [0], [0], [1], [0, 0, 1, 1], [], []>} : vector<32x256xf32>, vector<256x128xf32>, vector<32x128xf32> -> vector<32x128xf32>
    %114 = vector.shape_cast %113 : vector<32x128xf32> to vector<2x16x128xf32>
    %c0_86 = arith.constant 0 : index
    %c0_87 = arith.constant 0 : index
    %115 = vector.load %arg17[%c0_86, %c0_87] : memref<1x128xf32, #tpu.memory_space<vmem>>, vector<1x128xf32>
    %116 = vector.shape_cast %115 : vector<1x128xf32> to vector<1x1x128xf32>
    %117 = vector.broadcast %116 : vector<1x1x128xf32> to vector<2x16x128xf32>
    %118 = arith.addf %114, %117 : vector<2x16x128xf32>
    %cst_88 = arith.constant 0.00999999977 : f32
    %119 = vector.broadcast %cst_88 : f32 to vector<2x16x128xf32>
    %120 = arith.mulf %119, %118 : vector<2x16x128xf32>
    %121 = arith.maximumf %118, %120 : vector<2x16x128xf32>
    %c0_89 = arith.constant 0 : index
    %c8_90 = arith.constant 8 : index
    %c0_91 = arith.constant 0 : index
    %122 = vector.load %arg21[%c0_89, %c8_90, %c0_91] : memref<2x24x128xf32, #tpu.memory_space<vmem>>, vector<2x16x128xf32>
    tpu.vector_store %arg21[%c0_89, %c8_90, %c0_91], %121 {strides = array<i32>} : memref<2x24x128xf32, #tpu.memory_space<vmem>>, vector<2x16x128xf32>,
    %c0_92 = arith.constant 0 : index
    %c0_93 = arith.constant 0 : index
    %c0_94 = arith.constant 0 : index
    %123 = vector.load %arg21[%c0_92, %c0_93, %c0_94] : memref<2x24x128xf32, #tpu.memory_space<vmem>>, vector<2x16x128xf32>
    %124 = tpu.concatenate %123, %121 in 2 : vector<2x16x128xf32>, vector<2x16x128xf32> -> vector<2x16x256xf32>
    %c0_95 = arith.constant 0 : index
    %c0_96 = arith.constant 0 : index
    %125 = vector.load %arg18[%c0_95, %c0_96] : memref<256x128xf32, #tpu.memory_space<vmem>>, vector<256x128xf32>
    %126 = vector.shape_cast %124 : vector<2x16x256xf32> to vector<32x256xf32>
    %cst_97 = arith.constant dense<0.000000e+00> : vector<32x128xf32>
    %127 = tpu.matmul %126, %125, %cst_97 {dimension_numbers = #tpu.dot_dimension_numbers<[1], [0], [0], [1], [0, 0, 1, 1], [], []>} : vector<32x256xf32>, vector<256x128xf32>, vector<32x128xf32> -> vector<32x128xf32>
    %128 = vector.shape_cast %127 : vector<32x128xf32> to vector<2x16x128xf32>
    %c0_98 = arith.constant 0 : index
    %c0_99 = arith.constant 0 : index
    %129 = vector.load %arg19[%c0_98, %c0_99] : memref<1x128xf32, #tpu.memory_space<vmem>>, vector<1x128xf32>
    %130 = vector.shape_cast %129 : vector<1x128xf32> to vector<1x1x128xf32>
    %131 = vector.broadcast %130 : vector<1x1x128xf32> to vector<2x16x128xf32>
    %132 = arith.addf %128, %131 : vector<2x16x128xf32>
    %cst_100 = arith.constant 0.00999999977 : f32
    %133 = vector.broadcast %cst_100 : f32 to vector<2x16x128xf32>
    %134 = arith.mulf %133, %132 : vector<2x16x128xf32>
    %135 = arith.maximumf %132, %134 : vector<2x16x128xf32>
    %136 = arith.addf %135, %107 : vector<2x16x128xf32>
    %c0_101 = arith.constant 0 : index
    %c0_102 = arith.constant 0 : index
    %c0_103 = arith.constant 0 : index
    %137 = vector.load %arg20[%c0_101, %c0_102, %c0_103] : memref<2x16x128xf32, #tpu.memory_space<vmem>>, vector<2x16x128xf32>
    tpu.vector_store %arg20[%c0_101, %c0_102, %c0_103], %136 {strides = array<i32>} : memref<2x16x128xf32, #tpu.memory_space<vmem>>, vector<2x16x128xf32>,
    return
  }
  func.func @transform_0(%arg0: i32) -> (i32, i32, i32) {
    %c0_i32 = arith.constant 0 : i32
    %c0_i32_0 = arith.constant 0 : i32
    %c0_i32_1 = arith.constant 0 : i32
    return %arg0, %c0_i32, %c0_i32_0 : i32, i32, i32
  }
  func.func @transform_1(%arg0: i32) -> (i32, i32) {
    %c0_i32 = arith.constant 0 : i32
    %c0_i32_0 = arith.constant 0 : i32
    %c0_i32_1 = arith.constant 0 : i32
    return %c0_i32, %c0_i32_0 : i32, i32
  }
  func.func @transform_2(%arg0: i32) -> (i32, i32) {
    %c0_i32 = arith.constant 0 : i32
    %c0_i32_0 = arith.constant 0 : i32
    %c0_i32_1 = arith.constant 0 : i32
    return %c0_i32, %c0_i32_0 : i32, i32
  }
  func.func @transform_3(%arg0: i32) -> (i32, i32) {
    %c0_i32 = arith.constant 0 : i32
    %c0_i32_0 = arith.constant 0 : i32
    %c0_i32_1 = arith.constant 0 : i32
    return %c0_i32, %c0_i32_0 : i32, i32
  }
  func.func @transform_4(%arg0: i32) -> (i32, i32) {
    %c0_i32 = arith.constant 0 : i32
    %c0_i32_0 = arith.constant 0 : i32
    %c0_i32_1 = arith.constant 0 : i32
    return %c0_i32, %c0_i32_0 : i32, i32
  }
  func.func @transform_5(%arg0: i32) -> (i32, i32) {
    %c0_i32 = arith.constant 0 : i32
    %c0_i32_0 = arith.constant 0 : i32
    %c0_i32_1 = arith.constant 0 : i32
    return %c0_i32, %c0_i32_0 : i32, i32
  }
  func.func @transform_6(%arg0: i32) -> (i32, i32) {
    %c0_i32 = arith.constant 0 : i32
    %c0_i32_0 = arith.constant 0 : i32
    %c0_i32_1 = arith.constant 0 : i32
    return %c0_i32, %c0_i32_0 : i32, i32
  }
  func.func @transform_7(%arg0: i32) -> (i32, i32) {
    %c0_i32 = arith.constant 0 : i32
    %c0_i32_0 = arith.constant 0 : i32
    %c0_i32_1 = arith.constant 0 : i32
    return %c0_i32, %c0_i32_0 : i32, i32
  }
  func.func @transform_8(%arg0: i32) -> (i32, i32) {
    %c0_i32 = arith.constant 0 : i32
    %c0_i32_0 = arith.constant 0 : i32
    %c0_i32_1 = arith.constant 0 : i32
    return %c0_i32, %c0_i32_0 : i32, i32
  }
  func.func @transform_9(%arg0: i32) -> (i32, i32) {
    %c0_i32 = arith.constant 0 : i32
    %c0_i32_0 = arith.constant 0 : i32
    %c0_i32_1 = arith.constant 0 : i32
    return %c0_i32, %c0_i32_0 : i32, i32
  }
  func.func @transform_10(%arg0: i32) -> (i32, i32) {
    %c0_i32 = arith.constant 0 : i32
    %c0_i32_0 = arith.constant 0 : i32
    %c0_i32_1 = arith.constant 0 : i32
    return %c0_i32, %c0_i32_0 : i32, i32
  }
  func.func @transform_11(%arg0: i32) -> (i32, i32) {
    %c0_i32 = arith.constant 0 : i32
    %c0_i32_0 = arith.constant 0 : i32
    %c0_i32_1 = arith.constant 0 : i32
    return %c0_i32, %c0_i32_0 : i32, i32
  }
  func.func @transform_12(%arg0: i32) -> (i32, i32) {
    %c0_i32 = arith.constant 0 : i32
    %c0_i32_0 = arith.constant 0 : i32
    %c0_i32_1 = arith.constant 0 : i32
    return %c0_i32, %c0_i32_0 : i32, i32
  }
  func.func @transform_13(%arg0: i32) -> (i32, i32) {
    %c0_i32 = arith.constant 0 : i32
    %c0_i32_0 = arith.constant 0 : i32
    %c0_i32_1 = arith.constant 0 : i32
    return %c0_i32, %c0_i32_0 : i32, i32
  }
  func.func @transform_14(%arg0: i32) -> (i32, i32) {
    %c0_i32 = arith.constant 0 : i32
    %c0_i32_0 = arith.constant 0 : i32
    %c0_i32_1 = arith.constant 0 : i32
    return %c0_i32, %c0_i32_0 : i32, i32
  }
  func.func @transform_15(%arg0: i32) -> (i32, i32) {
    %c0_i32 = arith.constant 0 : i32
    %c0_i32_0 = arith.constant 0 : i32
    %c0_i32_1 = arith.constant 0 : i32
    return %c0_i32, %c0_i32_0 : i32, i32
  }
  func.func @transform_16(%arg0: i32) -> (i32, i32) {
    %c0_i32 = arith.constant 0 : i32
    %c0_i32_0 = arith.constant 0 : i32
    %c0_i32_1 = arith.constant 0 : i32
    return %c0_i32, %c0_i32_0 : i32, i32
  }
  func.func @transform_17(%arg0: i32) -> (i32, i32) {
    %c0_i32 = arith.constant 0 : i32
    %c0_i32_0 = arith.constant 0 : i32
    %c0_i32_1 = arith.constant 0 : i32
    return %c0_i32, %c0_i32_0 : i32, i32
  }
  func.func @transform_18(%arg0: i32) -> (i32, i32) {
    %c0_i32 = arith.constant 0 : i32
    %c0_i32_0 = arith.constant 0 : i32
    %c0_i32_1 = arith.constant 0 : i32
    return %c0_i32, %c0_i32_0 : i32, i32
  }
  func.func @transform_19(%arg0: i32) -> (i32, i32, i32) {
    %c0_i32 = arith.constant 0 : i32
    %c0_i32_0 = arith.constant 0 : i32
    %c0_i32_1 = arith.constant 0 : i32
    return %arg0, %c0_i32, %c0_i32_0 : i32, i32, i32
  }
}

</mosaic_0001>

<llo_original>
// kernel: tpu_custom_call.1
$region0: #{tpu_custom_call.1}
  #allocation0 [shape = 'u32[]', space=smem, size = 0x4, offset = 0x4, fixed_abs, tag = 'smem constant byte address 0x4 - core index']
  #allocation1 [shape = 'u32[144,128]{1,0:T(1,128)}', space=vmem, size = 0x12000, scoped, tag = 'internal scratch']
  #allocation2 [shape = 'f32[2,24,128]{2,1,0:T(8,128)}', space=vmem, size = 0x6000, scoped, tag = 'scratch operand']
  %s0 = inlined_call_operand.hbm [shape: f32[2,16,128], index: 0, kind: input, shape index: {}]
  %s1 = inlined_call_operand.hbm [shape: f32[256,128], index: 1, kind: input, shape index: {}]
  %s2 = inlined_call_operand.vmem [shape: f32[1,128], index: 2, kind: input, shape index: {}]
  %s3 = inlined_call_operand.hbm [shape: f32[256,128], index: 3, kind: input, shape index: {}]
  %s4 = inlined_call_operand.vmem [shape: f32[1,128], index: 4, kind: input, shape index: {}]
  %s5 = inlined_call_operand.hbm [shape: f32[128,128], index: 5, kind: input, shape index: {}]
  %s6 = inlined_call_operand.vmem [shape: f32[1,128], index: 6, kind: input, shape index: {}]
  %s7 = inlined_call_operand.hbm [shape: f32[256,128], index: 7, kind: input, shape index: {}]
  %s8 = inlined_call_operand.vmem [shape: f32[1,128], index: 8, kind: input, shape index: {}]
  %s9 = inlined_call_operand.hbm [shape: f32[256,128], index: 9, kind: input, shape index: {}]
  %s10 = inlined_call_operand.vmem [shape: f32[1,128], index: 10, kind: input, shape index: {}]
  %s11 = inlined_call_operand.hbm [shape: f32[256,128], index: 11, kind: input, shape index: {}]
  %s12 = inlined_call_operand.vmem [shape: f32[1,128], index: 12, kind: input, shape index: {}]
  %s13 = inlined_call_operand.hbm [shape: f32[256,128], index: 13, kind: input, shape index: {}]
  %s14 = inlined_call_operand.vmem [shape: f32[1,128], index: 14, kind: input, shape index: {}]
  %s15 = inlined_call_operand.hbm [shape: f32[256,128], index: 15, kind: input, shape index: {}]
  %s16 = inlined_call_operand.vmem [shape: f32[1,128], index: 16, kind: input, shape index: {}]
  %s17 = inlined_call_operand.hbm [shape: f32[256,128], index: 17, kind: input, shape index: {}]
  %s18 = inlined_call_operand.vmem [shape: f32[1,128], index: 18, kind: input, shape index: {}]
  %s19 = inlined_call_operand.hbm [shape: f32[2,16,128], index: 19, kind: output, shape index: {}]
  %s20 = sld [smem:[#allocation0]]
  $region126: #{tpu_custom_call.1} parent=0
    _
  %s22 = ssub.s32 1, %s20
  %s23 = scalar_select 0, %s22, %s20
  $region1: #{tpu_custom_call.1} parent=0
    #allocation3 [shape = 'u8[16384]{0}', space=vmem, size = 0x4000, scoped, tag = 'input window, operand 0, single buffered']
    #allocation4 [shape = 's32[1]{0}', space=sflag, size = 0x4, scoped, tag = 'scoped memory for tpu_custom_call.1']
    #allocation5 [shape = 's32[1]{0}', space=sflag, size = 0x4, scoped, tag = 'scoped memory for tpu_custom_call.1']
    #allocation6 [shape = 'u8[131072]{0}', space=vmem, size = 0x20000, scoped, tag = 'input window, operand 1, single buffered']
    #allocation7 [shape = 's32[1]{0}', space=sflag, size = 0x4, scoped, tag = 'scoped memory for tpu_custom_call.1']
    #allocation8 [shape = 'u8[131072]{0}', space=vmem, size = 0x20000, scoped, tag = 'input window, operand 3, single buffered']
    #allocation9 [shape = 'u8[65536]{0}', space=vmem, size = 0x10000, scoped, tag = 'input window, operand 5, single buffered']
    #allocation10 [shape = 's32[1]{0}', space=sflag, size = 0x4, scoped, tag = 'scoped memory for tpu_custom_call.1']
    #allocation11 [shape = 'u8[131072]{0}', space=vmem, size = 0x20000, scoped, tag = 'input window, operand 7, single buffered']
    #allocation12 [shape = 'u8[131072]{0}', space=vmem, size = 0x20000, scoped, tag = 'input window, operand 9, single buffered']
    #allocation13 [shape = 's32[1]{0}', space=sflag, size = 0x4, scoped, tag = 'scoped memory for tpu_custom_call.1']
    #allocation14 [shape = 'u8[131072]{0}', space=vmem, size = 0x20000, scoped, tag = 'input window, operand 11, single buffered']
    #allocation15 [shape = 'u8[131072]{0}', space=vmem, size = 0x20000, scoped, tag = 'input window, operand 13, single buffered']
    #allocation16 [shape = 's32[1]{0}', space=sflag, size = 0x4, scoped, tag = 'scoped memory for tpu_custom_call.1']
    #allocation17 [shape = 'u8[131072]{0}', space=vmem, size = 0x20000, scoped, tag = 'input window, operand 15, single buffered']
    #allocation18 [shape = 'u8[131072]{0}', space=vmem, size = 0x20000, scoped, tag = 'input window, operand 17, single buffered']
    #allocation19 [shape = 's32[1]{0}', space=sflag, size = 0x4, scoped, tag = 'scoped memory for tpu_custom_call.1']
    #allocation20 [shape = 'u8[16384]{0}', space=vmem, size = 0x4000, scoped, tag = 'output window, operand 0, single buffered']
    %24 = vsyncpa [#allocation4], 0
    %25 = vsyncpa [#allocation7], 0
    %26 = vsyncpa [#allocation10], 0
    %27 = vsyncpa [#allocation13], 0
    %28 = vsyncpa [#allocation16], 0
    %29 = vsyncpa [#allocation19], 0
    %30 = vsyncpa [#allocation5], 0
    // Predicated region
    $region2: #{tpu_custom_call.1} parent=1 // pred_check
      _
    $region3: #{tpu_custom_call.1} parent=1 // pred_check_branch
      %32 = sbr.rel (0) target = $region5
    $region4: #{tpu_custom_call.1} parent=1 // pred_region
      %s34 = ssub.s32 512, 512
      %35 = vsyncadd [#allocation4], %s34
      %s36 = sshll.u32 [#allocation3], 4
      %s37 = int_to_ptr.vmem [resolvable:$true] %s36
      %42 = dma.hbm_to_vmem [thread:$0]  %s0, 512, %s37, [#allocation4], 128, 128, 8
    $region5: #{tpu_custom_call.1} parent=1 // pred_fallthru
      _
    // Predicated region
    $region6: #{tpu_custom_call.1} parent=1 // pred_check
      _
    $region7: #{tpu_custom_call.1} parent=1 // pred_check_branch
      %44 = sbr.rel (0) target = $region9
    $region8: #{tpu_custom_call.1} parent=1 // pred_region
      %s46 = ssub.s32 4096, 4096
      %47 = vsyncadd [#allocation7], %s46
      %s48 = sshll.u32 [#allocation6], 4
      %s49 = int_to_ptr.vmem [resolvable:$true] %s48
      %54 = dma.hbm_to_vmem [thread:$0]  %s1, 4096, %s49, [#allocation7], 128, 128, 8
    $region9: #{tpu_custom_call.1} parent=1 // pred_fallthru
      _
    // Predicated region
    $region10: #{tpu_custom_call.1} parent=1 // pred_check
      _
    $region11: #{tpu_custom_call.1} parent=1 // pred_check_branch
      %56 = sbr.rel (0) target = $region13
    $region12: #{tpu_custom_call.1} parent=1 // pred_region
      _
    $region13: #{tpu_custom_call.1} parent=1 // pred_fallthru
      _
    // Predicated region
    $region14: #{tpu_custom_call.1} parent=1 // pred_check
      _
    $region15: #{tpu_custom_call.1} parent=1 // pred_check_branch
      %58 = sbr.rel (0) target = $region17
    $region16: #{tpu_custom_call.1} parent=1 // pred_region
      %s60 = ssub.s32 4096, 4096
      %61 = vsyncadd [#allocation7], %s60
      %s62 = sshll.u32 [#allocation8], 4
      %s63 = int_to_ptr.vmem [resolvable:$true] %s62
      %68 = dma.hbm_to_vmem [thread:$0]  %s3, 4096, %s63, [#allocation7], 128, 128, 8
    $region17: #{tpu_custom_call.1} parent=1 // pred_fallthru
      _
    // Predicated region
    $region18: #{tpu_custom_call.1} parent=1 // pred_check
      _
    $region19: #{tpu_custom_call.1} parent=1 // pred_check_branch
      %70 = sbr.rel (0) target = $region21
    $region20: #{tpu_custom_call.1} parent=1 // pred_region
      _
    $region21: #{tpu_custom_call.1} parent=1 // pred_fallthru
      _
    // Predicated region
    $region22: #{tpu_custom_call.1} parent=1 // pred_check
      _
    $region23: #{tpu_custom_call.1} parent=1 // pred_check_branch
      %72 = sbr.rel (0) target = $region25
    $region24: #{tpu_custom_call.1} parent=1 // pred_region
      %s74 = ssub.s32 2048, 2048
      %75 = vsyncadd [#allocation10], %s74
      %s76 = sshll.u32 [#allocation9], 4
      %s77 = int_to_ptr.vmem [resolvable:$true] %s76
      %82 = dma.hbm_to_vmem [thread:$0]  %s5, 2048, %s77, [#allocation10], 128, 128, 8
    $region25: #{tpu_custom_call.1} parent=1 // pred_fallthru
      _
    // Predicated region
    $region26: #{tpu_custom_call.1} parent=1 // pred_check
      _
    $region27: #{tpu_custom_call.1} parent=1 // pred_check_branch
      %84 = sbr.rel (0) target = $region29
    $region28: #{tpu_custom_call.1} parent=1 // pred_region
      _
    $region29: #{tpu_custom_call.1} parent=1 // pred_fallthru
      _
    // Predicated region
    $region30: #{tpu_custom_call.1} parent=1 // pred_check
      _
    $region31: #{tpu_custom_call.1} parent=1 // pred_check_branch
      %86 = sbr.rel (0) target = $region33
    $region32: #{tpu_custom_call.1} parent=1 // pred_region
      %s88 = ssub.s32 4096, 4096
      %89 = vsyncadd [#allocation10], %s88
      %s90 = sshll.u32 [#allocation11], 4
      %s91 = int_to_ptr.vmem [resolvable:$true] %s90
      %96 = dma.hbm_to_vmem [thread:$0]  %s7, 4096, %s91, [#allocation10], 128, 128, 8
    $region33: #{tpu_custom_call.1} parent=1 // pred_fallthru
      _
    // Predicated region
    $region34: #{tpu_custom_call.1} parent=1 // pred_check
      _
    $region35: #{tpu_custom_call.1} parent=1 // pred_check_branch
      %98 = sbr.rel (0) target = $region37
    $region36: #{tpu_custom_call.1} parent=1 // pred_region
      _
    $region37: #{tpu_custom_call.1} parent=1 // pred_fallthru
      _
    // Predicated region
    $region38: #{tpu_custom_call.1} parent=1 // pred_check
      _
    $region39: #{tpu_custom_call.1} parent=1 // pred_check_branch
      %100 = sbr.rel (0) target = $region41
    $region40: #{tpu_custom_call.1} parent=1 // pred_region
      %s102 = ssub.s32 4096, 4096
      %103 = vsyncadd [#allocation13], %s102
      %s104 = sshll.u32 [#allocation12], 4
      %s105 = int_to_ptr.vmem [resolvable:$true] %s104
      %110 = dma.hbm_to_vmem [thread:$0]  %s9, 4096, %s105, [#allocation13], 128, 128, 8
    $region41: #{tpu_custom_call.1} parent=1 // pred_fallthru
      _
    // Predicated region
    $region42: #{tpu_custom_call.1} parent=1 // pred_check
      _
    $region43: #{tpu_custom_call.1} parent=1 // pred_check_branch
      %112 = sbr.rel (0) target = $region45
    $region44: #{tpu_custom_call.1} parent=1 // pred_region
      _
    $region45: #{tpu_custom_call.1} parent=1 // pred_fallthru
      _
    // Predicated region
    $region46: #{tpu_custom_call.1} parent=1 // pred_check
      _
    $region47: #{tpu_custom_call.1} parent=1 // pred_check_branch
      %114 = sbr.rel (0) target = $region49
    $region48: #{tpu_custom_call.1} parent=1 // pred_region
      %s116 = ssub.s32 4096, 4096
      %117 = vsyncadd [#allocation13], %s116
      %s118 = sshll.u32 [#allocation14], 4
      %s119 = int_to_ptr.vmem [resolvable:$true] %s118
      %124 = dma.hbm_to_vmem [thread:$0]  %s11, 4096, %s119, [#allocation13], 128, 128, 8
    $region49: #{tpu_custom_call.1} parent=1 // pred_fallthru
      _
    // Predicated region
    $region50: #{tpu_custom_call.1} parent=1 // pred_check
      _
    $region51: #{tpu_custom_call.1} parent=1 // pred_check_branch
      %126 = sbr.rel (0) target = $region53
    $region52: #{tpu_custom_call.1} parent=1 // pred_region
      _
    $region53: #{tpu_custom_call.1} parent=1 // pred_fallthru
      _
    // Predicated region
    $region54: #{tpu_custom_call.1} parent=1 // pred_check
      _
    $region55: #{tpu_custom_call.1} parent=1 // pred_check_branch
      %128 = sbr.rel (0) target = $region57
    $region56: #{tpu_custom_call.1} parent=1 // pred_region
      %s130 = ssub.s32 4096, 4096
      %131 = vsyncadd [#allocation16], %s130
      %s132 = sshll.u32 [#allocation15], 4
      %s133 = int_to_ptr.vmem [resolvable:$true] %s132
      %138 = dma.hbm_to_vmem [thread:$0]  %s13, 4096, %s133, [#allocation16], 128, 128, 8
    $region57: #{tpu_custom_call.1} parent=1 // pred_fallthru
      _
    // Predicated region
    $region58: #{tpu_custom_call.1} parent=1 // pred_check
      _
    $region59: #{tpu_custom_call.1} parent=1 // pred_check_branch
      %140 = sbr.rel (0) target = $region61
    $region60: #{tpu_custom_call.1} parent=1 // pred_region
      _
    $region61: #{tpu_custom_call.1} parent=1 // pred_fallthru
      _
    // Predicated region
    $region62: #{tpu_custom_call.1} parent=1 // pred_check
      _
    $region63: #{tpu_custom_call.1} parent=1 // pred_check_branch
      %142 = sbr.rel (0) target = $region65
    $region64: #{tpu_custom_call.1} parent=1 // pred_region
      %s144 = ssub.s32 4096, 4096
      %145 = vsyncadd [#allocation16], %s144
      %s146 = sshll.u32 [#allocation17], 4
      %s147 = int_to_ptr.vmem [resolvable:$true] %s146
      %152 = dma.hbm_to_vmem [thread:$0]  %s15, 4096, %s147, [#allocation16], 128, 128, 8
    $region65: #{tpu_custom_call.1} parent=1 // pred_fallthru
      _
    // Predicated region
    $region66: #{tpu_custom_call.1} parent=1 // pred_check
      _
    $region67: #{tpu_custom_call.1} parent=1 // pred_check_branch
      %154 = sbr.rel (0) target = $region69
    $region68: #{tpu_custom_call.1} parent=1 // pred_region
      _
    $region69: #{tpu_custom_call.1} parent=1 // pred_fallthru
      _
    // Predicated region
    $region70: #{tpu_custom_call.1} parent=1 // pred_check
      _
    $region71: #{tpu_custom_call.1} parent=1 // pred_check_branch
      %156 = sbr.rel (0) target = $region73
    $region72: #{tpu_custom_call.1} parent=1 // pred_region
      %s158 = ssub.s32 4096, 4096
      %159 = vsyncadd [#allocation19], %s158
      %s160 = sshll.u32 [#allocation18], 4
      %s161 = int_to_ptr.vmem [resolvable:$true] %s160
      %166 = dma.hbm_to_vmem [thread:$0]  %s17, 4096, %s161, [#allocation19], 128, 128, 8
    $region73: #{tpu_custom_call.1} parent=1 // pred_fallthru
      _
    // Predicated region
    $region74: #{tpu_custom_call.1} parent=1 // pred_check
      _
    $region75: #{tpu_custom_call.1} parent=1 // pred_check_branch
      %168 = sbr.rel (0) target = $region77
    $region76: #{tpu_custom_call.1} parent=1 // pred_region
      _
    $region77: #{tpu_custom_call.1} parent=1 // pred_fallthru
      _
    // Predicated region
    $region78: #{tpu_custom_call.1} parent=1 // pred_check
      _
    $region79: #{tpu_custom_call.1} parent=1 // pred_check_branch
      %170 = sbr.rel (0) target = $region81
    $region80: #{tpu_custom_call.1} parent=1 // pred_region
      %171 = dma.done [#allocation4], 512
    $region81: #{tpu_custom_call.1} parent=1 // pred_fallthru
      _
    // Predicated region
    $region82: #{tpu_custom_call.1} parent=1 // pred_check
      _
    $region83: #{tpu_custom_call.1} parent=1 // pred_check_branch
      %173 = sbr.rel (0) target = $region85
    $region84: #{tpu_custom_call.1} parent=1 // pred_region
      %174 = dma.done [#allocation7], 4096
    $region85: #{tpu_custom_call.1} parent=1 // pred_fallthru
      _
    // Predicated region
    $region86: #{tpu_custom_call.1} parent=1 // pred_check
      _
    $region87: #{tpu_custom_call.1} parent=1 // pred_check_branch
      %176 = sbr.rel (0) target = $region89
    $region88: #{tpu_custom_call.1} parent=1 // pred_region
      %177 = dma.done [#allocation7], 4096
    $region89: #{tpu_custom_call.1} parent=1 // pred_fallthru
      _
    // Predicated region
    $region90: #{tpu_custom_call.1} parent=1 // pred_check
      _
    $region91: #{tpu_custom_call.1} parent=1 // pred_check_branch
      %179 = sbr.rel (0) target = $region93
    $region92: #{tpu_custom_call.1} parent=1 // pred_region
      %180 = dma.done [#allocation10], 2048
    $region93: #{tpu_custom_call.1} parent=1 // pred_fallthru
      _
    // Predicated region
    $region94: #{tpu_custom_call.1} parent=1 // pred_check
      _
    $region95: #{tpu_custom_call.1} parent=1 // pred_check_branch
      %182 = sbr.rel (0) target = $region97
    $region96: #{tpu_custom_call.1} parent=1 // pred_region
      %183 = dma.done [#allocation10], 4096
    $region97: #{tpu_custom_call.1} parent=1 // pred_fallthru
      _
    // Predicated region
    $region98: #{tpu_custom_call.1} parent=1 // pred_check
      _
    $region99: #{tpu_custom_call.1} parent=1 // pred_check_branch
      %185 = sbr.rel (0) target = $region101
    $region100: #{tpu_custom_call.1} parent=1 // pred_region
      %186 = dma.done [#allocation13], 4096
    $region101: #{tpu_custom_call.1} parent=1 // pred_fallthru
      _
    // Predicated region
    $region102: #{tpu_custom_call.1} parent=1 // pred_check
      _
    $region103: #{tpu_custom_call.1} parent=1 // pred_check_branch
      %188 = sbr.rel (0) target = $region105
    $region104: #{tpu_custom_call.1} parent=1 // pred_region
      %189 = dma.done [#allocation13], 4096
    $region105: #{tpu_custom_call.1} parent=1 // pred_fallthru
      _
    // Predicated region
    $region106: #{tpu_custom_call.1} parent=1 // pred_check
      _
    $region107: #{tpu_custom_call.1} parent=1 // pred_check_branch
      %191 = sbr.rel (0) target = $region109
    $region108: #{tpu_custom_call.1} parent=1 // pred_region
      %192 = dma.done [#allocation16], 4096
    $region109: #{tpu_custom_call.1} parent=1 // pred_fallthru
      _
    // Predicated region
    $region110: #{tpu_custom_call.1} parent=1 // pred_check
      _
    $region111: #{tpu_custom_call.1} parent=1 // pred_check_branch
      %194 = sbr.rel (0) target = $region113
    $region112: #{tpu_custom_call.1} parent=1 // pred_region
      %195 = dma.done [#allocation16], 4096
    $region113: #{tpu_custom_call.1} parent=1 // pred_fallthru
      _
    // Predicated region
    $region114: #{tpu_custom_call.1} parent=1 // pred_check
      _
    $region115: #{tpu_custom_call.1} parent=1 // pred_check_branch
      %197 = sbr.rel (0) target = $region117
    $region116: #{tpu_custom_call.1} parent=1 // pred_region
      %198 = dma.done [#allocation19], 4096
    $region117: #{tpu_custom_call.1} parent=1 // pred_fallthru
      _
    %199 = vst [vmem:[#allocation2] sm:$0xff] 0.0
    %200 = vst [vmem:[#allocation2 + $0x18] sm:$0xff] 0.0
    %v201 = vld [vmem:[#allocation3] sm:$0xff]
    %v202 = vld [vmem:[#allocation3 + $0x8] sm:$0xff]
    %v203 = vld [vmem:[#allocation3 + $0x10] sm:$0xff]
    %v204 = vld [vmem:[#allocation3 + $0x18] sm:$0xff]
    %205 = vst [vmem:[#allocation2 + $0x8] sm:$0xff] %v201
    %206 = vst [vmem:[#allocation2 + $0x10] sm:$0xff] %v202
    %207 = vst [vmem:[#allocation2 + $0x20] sm:$0xff] %v203
    %208 = vst [vmem:[#allocation2 + $0x28] sm:$0xff] %v204
    %v209 = vld [vmem:[#allocation2 + $0x7] sm:$0xff]
    %v210 = vld [vmem:[#allocation2 + $0xf] sm:$0xff]
    %v211 = vld [vmem:[#allocation2 + $0x1f] sm:$0xff]
    %v212 = vld [vmem:[#allocation2 + $0x27] sm:$0xff]
    %v213 = vld [vmem:[#allocation6] sm:$0x1]
    %215 = vset.pattern.permute.xlu0 0
    %216 = vperm.xlu0 %215, %v209
    %v217 = vpop.permute.xlu0 %216
    %220 = vset.pattern.permute.xlu0 0
    %221 = vperm.xlu0 %220, %v210
    %v222 = vpop.permute.xlu0 %221
    %225 = vset.pattern.permute.xlu0 0
    %226 = vperm.xlu0 %225, %v211
    %v227 = vpop.permute.xlu0 %226
    %230 = vset.pattern.permute.xlu0 0
    %231 = vperm.xlu0 %230, %v212
    %v232 = vpop.permute.xlu0 %231
    %v234 = vlaneseq
    %v235 = vshrl.u32 %v234, 7
    %v236 = vsub.s32 0, %v235
    %v237 = vrot.slane %v213, %v236
    %v238 = vmul.f32 %v217, %v237
    %v239 = vmul.f32 %v222, %v237
    %v240 = vmul.f32 %v227, %v237
    %v241 = vmul.f32 %v232, %v237
    %v242 = vld [vmem:[#allocation6 + $0x80] sm:$0x1]
    %244 = vset.pattern.permute.xlu0 0
    %245 = vperm.xlu0 %244, %v201
    %v246 = vpop.permute.xlu0 %245
    %249 = vset.pattern.permute.xlu0 0
    %250 = vperm.xlu0 %249, %v202
    %v251 = vpop.permute.xlu0 %250
    %254 = vset.pattern.permute.xlu0 0
    %255 = vperm.xlu0 %254, %v203
    %v256 = vpop.permute.xlu0 %255
    %259 = vset.pattern.permute.xlu0 0
    %260 = vperm.xlu0 %259, %v204
    %v261 = vpop.permute.xlu0 %260
    %v263 = vlaneseq
    %v264 = vshrl.u32 %v263, 7
    %v265 = vsub.s32 0, %v264
    %v266 = vrot.slane %v242, %v265
    %v267 = vmul.f32 %v246, %v266
    %v268 = vmul.f32 %v251, %v266
    %v269 = vmul.f32 %v256, %v266
    %v270 = vmul.f32 %v261, %v266
    %v271 = vadd.f32 %v238, %v267
    %v272 = vadd.f32 %v239, %v268
    %v273 = vadd.f32 %v240, %v269
    %v274 = vadd.f32 %v241, %v270
    %v275 = vld [vmem:[%s2] sm:$0x1]
    %v277 = vlaneseq
    %v278 = vshrl.u32 %v277, 7
    %v279 = vsub.s32 0, %v278
    %v280 = vrot.slane %v275, %v279
    %v282 = vadd.f32 %v271, %v280
    %v283 = vadd.f32 %v272, %v280
    %v284 = vadd.f32 %v273, %v280
    %v285 = vadd.f32 %v274, %v280
    %v286 = vmul.f32 %v282, 0.01
    %v287 = vmul.f32 %v283, 0.01
    %v288 = vmul.f32 %v284, 0.01
    %v289 = vmul.f32 %v285, 0.01
    %v290 = vmax.f32 %v282, %v286
    %v291 = vmax.f32 %v283, %v287
    %v292 = vmax.f32 %v284, %v288
    %v293 = vmax.f32 %v285, %v289
    %294 = vst [vmem:[#allocation2 + $0x8] sm:$0xff] %v290
    %295 = vst [vmem:[#allocation2 + $0x10] sm:$0xff] %v291
    %296 = vst [vmem:[#allocation2 + $0x20] sm:$0xff] %v292
    %297 = vst [vmem:[#allocation2 + $0x28] sm:$0xff] %v293
    %v298 = vld [vmem:[#allocation2 + $0x7] sm:$0xff]
    %v299 = vld [vmem:[#allocation2 + $0xf] sm:$0xff]
    %v300 = vld [vmem:[#allocation2 + $0x1f] sm:$0xff]
    %v301 = vld [vmem:[#allocation2 + $0x27] sm:$0xff]
    %v302 = vld [vmem:[#allocation8] sm:$0xff]
    %v303 = vld [vmem:[#allocation8 + $0x8] sm:$0xff]
    %v304 = vld [vmem:[#allocation8 + $0x10] sm:$0xff]
    %v305 = vld [vmem:[#allocation8 + $0x18] sm:$0xff]
    %v306 = vld [vmem:[#allocation8 + $0x20] sm:$0xff]
    %v307 = vld [vmem:[#allocation8 + $0x28] sm:$0xff]
    %v308 = vld [vmem:[#allocation8 + $0x30] sm:$0xff]
    %v309 = vld [vmem:[#allocation8 + $0x38] sm:$0xff]
    %v310 = vld [vmem:[#allocation8 + $0x40] sm:$0xff]
    %v311 = vld [vmem:[#allocation8 + $0x48] sm:$0xff]
    %v312 = vld [vmem:[#allocation8 + $0x50] sm:$0xff]
    %v313 = vld [vmem:[#allocation8 + $0x58] sm:$0xff]
    %v314 = vld [vmem:[#allocation8 + $0x60] sm:$0xff]
    %v315 = vld [vmem:[#allocation8 + $0x68] sm:$0xff]
    %v316 = vld [vmem:[#allocation8 + $0x70] sm:$0xff]
    %v317 = vld [vmem:[#allocation8 + $0x78] sm:$0xff]
    %v318 = vld [vmem:[#allocation8 + $0x80] sm:$0xff]
    %v319 = vld [vmem:[#allocation8 + $0x88] sm:$0xff]
    %v320 = vld [vmem:[#allocation8 + $0x90] sm:$0xff]
    %v321 = vld [vmem:[#allocation8 + $0x98] sm:$0xff]
    %v322 = vld [vmem:[#allocation8 + $0xa0] sm:$0xff]
    %v323 = vld [vmem:[#allocation8 + $0xa8] sm:$0xff]
    %v324 = vld [vmem:[#allocation8 + $0xb0] sm:$0xff]
    %v325 = vld [vmem:[#allocation8 + $0xb8] sm:$0xff]
    %v326 = vld [vmem:[#allocation8 + $0xc0] sm:$0xff]
    %v327 = vld [vmem:[#allocation8 + $0xc8] sm:$0xff]
    %v328 = vld [vmem:[#allocation8 + $0xd0] sm:$0xff]
    %v329 = vld [vmem:[#allocation8 + $0xd8] sm:$0xff]
    %v330 = vld [vmem:[#allocation8 + $0xe0] sm:$0xff]
    %v331 = vld [vmem:[#allocation8 + $0xe8] sm:$0xff]
    %v332 = vld [vmem:[#allocation8 + $0xf0] sm:$0xff]
    %v333 = vld [vmem:[#allocation8 + $0xf8] sm:$0xff]
    %334 = vmatprep.subr.mxu0 0.0
    %335 = vmatpush1.msra.mxu0 %v302
    %336 = vmatprep.subr.mxu0 0.0
    %337 = vmatpush1.msra.mxu0 %v303
    %338 = vmatprep.subr.mxu0 0.0
    %339 = vmatpush1.msra.mxu0 %v304
    %340 = vmatprep.subr.mxu0 0.0
    %341 = vmatpush1.msra.mxu0 %v305
    %342 = vmatprep.subr.mxu0 0.0
    %343 = vmatpush1.msra.mxu0 %v306
    %344 = vmatprep.subr.mxu0 0.0
    %345 = vmatpush1.msra.mxu0 %v307
    %346 = vmatprep.subr.mxu0 0.0
    %347 = vmatpush1.msra.mxu0 %v308
    %348 = vmatprep.subr.mxu0 0.0
    %349 = vmatpush1.msra.mxu0 %v309
    %350 = vmatprep.subr.mxu0 0.0
    %351 = vmatpush1.msra.mxu0 %v310
    %352 = vmatprep.subr.mxu0 0.0
    %353 = vmatpush1.msra.mxu0 %v311
    %354 = vmatprep.subr.mxu0 0.0
    %355 = vmatpush1.msra.mxu0 %v312
    %356 = vmatprep.subr.mxu0 0.0
    %357 = vmatpush1.msra.mxu0 %v313
    %358 = vmatprep.subr.mxu0 0.0
    %359 = vmatpush1.msra.mxu0 %v314
    %360 = vmatprep.subr.mxu0 0.0
    %361 = vmatpush1.msra.mxu0 %v315
    %362 = vmatprep.subr.mxu0 0.0
    %363 = vmatpush1.msra.mxu0 %v316
    %364 = vmatprep.subr.mxu0 0.0
    %365 = vmatpush1.msra.mxu0 %v317
    %366 = vmatprep.subr.mxu0 0.0
    %367 = vmatpush1.msra.mxu0 %v318
    %368 = vmatprep.subr.mxu0 0.0
    %369 = vmatpush1.msra.mxu0 %v319
    %370 = vmatprep.subr.mxu0 0.0
    %371 = vmatpush1.msra.mxu0 %v320
    %372 = vmatprep.subr.mxu0 0.0
    %373 = vmatpush1.msra.mxu0 %v321
    %374 = vmatprep.subr.mxu0 0.0
    %375 = vmatpush1.msra.mxu0 %v322
    %376 = vmatprep.subr.mxu0 0.0
    %377 = vmatpush1.msra.mxu0 %v323
    %378 = vmatprep.subr.mxu0 0.0
    %379 = vmatpush1.msra.mxu0 %v324
    %380 = vmatprep.subr.mxu0 0.0
    %381 = vmatpush1.msra.mxu0 %v325
    %382 = vmatprep.subr.mxu0 0.0
    %383 = vmatpush1.msra.mxu0 %v326
    %384 = vmatprep.subr.mxu0 0.0
    %385 = vmatpush1.msra.mxu0 %v327
    %386 = vmatprep.subr.mxu0 0.0
    %387 = vmatpush1.msra.mxu0 %v328
    %388 = vmatprep.subr.mxu0 0.0
    %389 = vmatpush1.msra.mxu0 %v329
    %390 = vmatprep.subr.mxu0 0.0
    %391 = vmatpush1.msra.mxu0 %v330
    %392 = vmatprep.subr.mxu0 0.0
    %393 = vmatpush1.msra.mxu0 %v331
    %394 = vmatprep.subr.mxu0 0.0
    %395 = vmatpush1.msra.mxu0 %v332
    %396 = vmatprep.subr.mxu0 0.0
    %397 = vmatpush1.msra.mxu0 %v333
    %398 = vmatprep.mubr.f32.mxu0 %v290
    %399 = vmatmul.mubr.f32.gmra.mrb[0].mxu0 %v298
    %v400 = vpop.f32.mrb[0].mxu0
    %v401 = vadd.f32 0.0, %v400
    %v402 = vpop.f32.mrb[0].mxu0
    %403 = vmatprep.mubr.f32.mxu0 %v291
    %404 = vmatmul.mubr.f32.gmra.mrb[0].mxu0 %v299
    %v405 = vpop.f32.mrb[0].mxu0
    %v406 = vadd.f32 0.0, %v405
    %v407 = vpop.f32.mrb[0].mxu0
    %408 = vmatprep.mubr.f32.mxu0 %v292
    %409 = vmatmul.mubr.f32.gmra.mrb[0].mxu0 %v300
    %v410 = vpop.f32.mrb[0].mxu0
    %v411 = vadd.f32 0.0, %v410
    %v412 = vpop.f32.mrb[0].mxu0
    %413 = vmatprep.mubr.f32.mxu0 %v293
    %414 = vmatmul.mubr.f32.gmra.mrb[0].mxu0 %v301
    %v415 = vpop.f32.mrb[0].mxu0
    %v416 = vadd.f32 0.0, %v415
    %v417 = vpop.f32.mrb[0].mxu0
    %418 = vdwg.mxu0
    %v419 = vld [vmem:[%s4] sm:$0x1]
    %v421 = vlaneseq
    %v422 = vshrl.u32 %v421, 7
    %v423 = vsub.s32 0, %v422
    %v424 = vrot.slane %v419, %v423
    %v426 = vadd.f32 %v401, %v424
    %v427 = vadd.f32 %v406, %v424
    %v428 = vadd.f32 %v411, %v424
    %v429 = vadd.f32 %v416, %v424
    %v430 = vmul.f32 %v426, 0.01
    %v431 = vmul.f32 %v427, 0.01
    %v432 = vmul.f32 %v428, 0.01
    %v433 = vmul.f32 %v429, 0.01
    %v434 = vmax.f32 %v426, %v430
    %v435 = vmax.f32 %v427, %v431
    %v436 = vmax.f32 %v428, %v432
    %v437 = vmax.f32 %v429, %v433
    %v438 = vld [vmem:[#allocation9] sm:$0x1]
    %v439 = vlaneseq
    %v440 = vshrl.u32 %v439, 7
    %v441 = vsub.s32 0, %v440
    %v442 = vrot.slane %v438, %v441
    %v443 = vmul.f32 %v246, %v442
    %v444 = vmul.f32 %v251, %v442
    %v445 = vmul.f32 %v256, %v442
    %v446 = vmul.f32 %v261, %v442
    %v447 = vld [vmem:[%s6] sm:$0x1]
    %v449 = vlaneseq
    %v450 = vshrl.u32 %v449, 7
    %v451 = vsub.s32 0, %v450
    %v452 = vrot.slane %v447, %v451
    %v454 = vadd.f32 %v443, %v452
    %v455 = vadd.f32 %v444, %v452
    %v456 = vadd.f32 %v445, %v452
    %v457 = vadd.f32 %v446, %v452
    %v458 = vadd.f32 %v434, %v454
    %v459 = vadd.f32 %v435, %v455
    %v460 = vadd.f32 %v436, %v456
    %v461 = vadd.f32 %v437, %v457
    %462 = vst [vmem:[#allocation2 + $0x8] sm:$0xff] %v458
    %463 = vst [vmem:[#allocation2 + $0x10] sm:$0xff] %v459
    %464 = vst [vmem:[#allocation2 + $0x20] sm:$0xff] %v460
    %465 = vst [vmem:[#allocation2 + $0x28] sm:$0xff] %v461
    %v466 = vld [vmem:[#allocation2 + $0x6] sm:$0xff]
    %v467 = vld [vmem:[#allocation2 + $0xe] sm:$0xff]
    %v468 = vld [vmem:[#allocation2 + $0x1e] sm:$0xff]
    %v469 = vld [vmem:[#allocation2 + $0x26] sm:$0xff]
    %v470 = vld [vmem:[#allocation11] sm:$0xff]
    %v471 = vld [vmem:[#allocation11 + $0x8] sm:$0xff]
    %v472 = vld [vmem:[#allocation11 + $0x10] sm:$0xff]
    %v473 = vld [vmem:[#allocation11 + $0x18] sm:$0xff]
    %v474 = vld [vmem:[#allocation11 + $0x20] sm:$0xff]
    %v475 = vld [vmem:[#allocation11 + $0x28] sm:$0xff]
    %v476 = vld [vmem:[#allocation11 + $0x30] sm:$0xff]
    %v477 = vld [vmem:[#allocation11 + $0x38] sm:$0xff]
    %v478 = vld [vmem:[#allocation11 + $0x40] sm:$0xff]
    %v479 = vld [vmem:[#allocation11 + $0x48] sm:$0xff]
    %v480 = vld [vmem:[#allocation11 + $0x50] sm:$0xff]
    %v481 = vld [vmem:[#allocation11 + $0x58] sm:$0xff]
    %v482 = vld [vmem:[#allocation11 + $0x60] sm:$0xff]
    %v483 = vld [vmem:[#allocation11 + $0x68] sm:$0xff]
    %v484 = vld [vmem:[#allocation11 + $0x70] sm:$0xff]
    %v485 = vld [vmem:[#allocation11 + $0x78] sm:$0xff]
    %v486 = vld [vmem:[#allocation11 + $0x80] sm:$0xff]
    %v487 = vld [vmem:[#allocation11 + $0x88] sm:$0xff]
    %v488 = vld [vmem:[#allocation11 + $0x90] sm:$0xff]
    %v489 = vld [vmem:[#allocation11 + $0x98] sm:$0xff]
    %v490 = vld [vmem:[#allocation11 + $0xa0] sm:$0xff]
    %v491 = vld [vmem:[#allocation11 + $0xa8] sm:$0xff]
    %v492 = vld [vmem:[#allocation11 + $0xb0] sm:$0xff]
    %v493 = vld [vmem:[#allocation11 + $0xb8] sm:$0xff]
    %v494 = vld [vmem:[#allocation11 + $0xc0] sm:$0xff]
    %v495 = vld [vmem:[#allocation11 + $0xc8] sm:$0xff]
    %v496 = vld [vmem:[#allocation11 + $0xd0] sm:$0xff]
    %v497 = vld [vmem:[#allocation11 + $0xd8] sm:$0xff]
    %v498 = vld [vmem:[#allocation11 + $0xe0] sm:$0xff]
    %v499 = vld [vmem:[#allocation11 + $0xe8] sm:$0xff]
    %v500 = vld [vmem:[#allocation11 + $0xf0] sm:$0xff]
    %v501 = vld [vmem:[#allocation11 + $0xf8] sm:$0xff]
    %502 = vmatprep.subr.mxu0 0.0
    %503 = vmatpush1.msra.mxu0 %v470
    %504 = vmatprep.subr.mxu0 0.0
    %505 = vmatpush1.msra.mxu0 %v471
    %506 = vmatprep.subr.mxu0 0.0
    %507 = vmatpush1.msra.mxu0 %v472
    %508 = vmatprep.subr.mxu0 0.0
    %509 = vmatpush1.msra.mxu0 %v473
    %510 = vmatprep.subr.mxu0 0.0
    %511 = vmatpush1.msra.mxu0 %v474
    %512 = vmatprep.subr.mxu0 0.0
    %513 = vmatpush1.msra.mxu0 %v475
    %514 = vmatprep.subr.mxu0 0.0
    %515 = vmatpush1.msra.mxu0 %v476
    %516 = vmatprep.subr.mxu0 0.0
    %517 = vmatpush1.msra.mxu0 %v477
    %518 = vmatprep.subr.mxu0 0.0
    %519 = vmatpush1.msra.mxu0 %v478
    %520 = vmatprep.subr.mxu0 0.0
    %521 = vmatpush1.msra.mxu0 %v479
    %522 = vmatprep.subr.mxu0 0.0
    %523 = vmatpush1.msra.mxu0 %v480
    %524 = vmatprep.subr.mxu0 0.0
    %525 = vmatpush1.msra.mxu0 %v481
    %526 = vmatprep.subr.mxu0 0.0
    %527 = vmatpush1.msra.mxu0 %v482
    %528 = vmatprep.subr.mxu0 0.0
    %529 = vmatpush1.msra.mxu0 %v483
    %530 = vmatprep.subr.mxu0 0.0
    %531 = vmatpush1.msra.mxu0 %v484
    %532 = vmatprep.subr.mxu0 0.0
    %533 = vmatpush1.msra.mxu0 %v485
    %534 = vmatprep.subr.mxu0 0.0
    %535 = vmatpush1.msra.mxu0 %v486
    %536 = vmatprep.subr.mxu0 0.0
    %537 = vmatpush1.msra.mxu0 %v487
    %538 = vmatprep.subr.mxu0 0.0
    %539 = vmatpush1.msra.mxu0 %v488
    %540 = vmatprep.subr.mxu0 0.0
    %541 = vmatpush1.msra.mxu0 %v489
    %542 = vmatprep.subr.mxu0 0.0
    %543 = vmatpush1.msra.mxu0 %v490
    %544 = vmatprep.subr.mxu0 0.0
    %545 = vmatpush1.msra.mxu0 %v491
    %546 = vmatprep.subr.mxu0 0.0
    %547 = vmatpush1.msra.mxu0 %v492
    %548 = vmatprep.subr.mxu0 0.0
    %549 = vmatpush1.msra.mxu0 %v493
    %550 = vmatprep.subr.mxu0 0.0
    %551 = vmatpush1.msra.mxu0 %v494
    %552 = vmatprep.subr.mxu0 0.0
    %553 = vmatpush1.msra.mxu0 %v495
    %554 = vmatprep.subr.mxu0 0.0
    %555 = vmatpush1.msra.mxu0 %v496
    %556 = vmatprep.subr.mxu0 0.0
    %557 = vmatpush1.msra.mxu0 %v497
    %558 = vmatprep.subr.mxu0 0.0
    %559 = vmatpush1.msra.mxu0 %v498
    %560 = vmatprep.subr.mxu0 0.0
    %561 = vmatpush1.msra.mxu0 %v499
    %562 = vmatprep.subr.mxu0 0.0
    %563 = vmatpush1.msra.mxu0 %v500
    %564 = vmatprep.subr.mxu0 0.0
    %565 = vmatpush1.msra.mxu0 %v501
    %566 = vmatprep.mubr.f32.mxu0 %v458
    %567 = vmatmul.mubr.f32.gmra.mrb[0].mxu0 %v466
    %v568 = vpop.f32.mrb[0].mxu0
    %v569 = vadd.f32 0.0, %v568
    %v570 = vpop.f32.mrb[0].mxu0
    %571 = vmatprep.mubr.f32.mxu0 %v459
    %572 = vmatmul.mubr.f32.gmra.mrb[0].mxu0 %v467
    %v573 = vpop.f32.mrb[0].mxu0
    %v574 = vadd.f32 0.0, %v573
    %v575 = vpop.f32.mrb[0].mxu0
    %576 = vmatprep.mubr.f32.mxu0 %v460
    %577 = vmatmul.mubr.f32.gmra.mrb[0].mxu0 %v468
    %v578 = vpop.f32.mrb[0].mxu0
    %v579 = vadd.f32 0.0, %v578
    %v580 = vpop.f32.mrb[0].mxu0
    %581 = vmatprep.mubr.f32.mxu0 %v461
    %582 = vmatmul.mubr.f32.gmra.mrb[0].mxu0 %v469
    %v583 = vpop.f32.mrb[0].mxu0
    %v584 = vadd.f32 0.0, %v583
    %v585 = vpop.f32.mrb[0].mxu0
    %586 = vdwg.mxu0
    %v587 = vld [vmem:[%s8] sm:$0x1]
    %v589 = vlaneseq
    %v590 = vshrl.u32 %v589, 7
    %v591 = vsub.s32 0, %v590
    %v592 = vrot.slane %v587, %v591
    %v594 = vadd.f32 %v569, %v592
    %v595 = vadd.f32 %v574, %v592
    %v596 = vadd.f32 %v579, %v592
    %v597 = vadd.f32 %v584, %v592
    %v598 = vmul.f32 %v594, 0.01
    %v599 = vmul.f32 %v595, 0.01
    %v600 = vmul.f32 %v596, 0.01
    %v601 = vmul.f32 %v597, 0.01
    %v602 = vmax.f32 %v594, %v598
    %v603 = vmax.f32 %v595, %v599
    %v604 = vmax.f32 %v596, %v600
    %v605 = vmax.f32 %v597, %v601
    %606 = vst [vmem:[#allocation2 + $0x8] sm:$0xff] %v602
    %607 = vst [vmem:[#allocation2 + $0x10] sm:$0xff] %v603
    %608 = vst [vmem:[#allocation2 + $0x20] sm:$0xff] %v604
    %609 = vst [vmem:[#allocation2 + $0x28] sm:$0xff] %v605
    %v610 = vld [vmem:[#allocation2 + $0x6] sm:$0xff]
    %v611 = vld [vmem:[#allocation2 + $0xe] sm:$0xff]
    %v612 = vld [vmem:[#allocation2 + $0x1e] sm:$0xff]
    %v613 = vld [vmem:[#allocation2 + $0x26] sm:$0xff]
    %v614 = vld [vmem:[#allocation12] sm:$0xff]
    %v615 = vld [vmem:[#allocation12 + $0x8] sm:$0xff]
    %v616 = vld [vmem:[#allocation12 + $0x10] sm:$0xff]
    %v617 = vld [vmem:[#allocation12 + $0x18] sm:$0xff]
    %v618 = vld [vmem:[#allocation12 + $0x20] sm:$0xff]
    %v619 = vld [vmem:[#allocation12 + $0x28] sm:$0xff]
    %v620 = vld [vmem:[#allocation12 + $0x30] sm:$0xff]
    %v621 = vld [vmem:[#allocation12 + $0x38] sm:$0xff]
    %v622 = vld [vmem:[#allocation12 + $0x40] sm:$0xff]
    %v623 = vld [vmem:[#allocation12 + $0x48] sm:$0xff]
    %v624 = vld [vmem:[#allocation12 + $0x50] sm:$0xff]
    %v625 = vld [vmem:[#allocation12 + $0x58] sm:$0xff]
    %v626 = vld [vmem:[#allocation12 + $0x60] sm:$0xff]
    %v627 = vld [vmem:[#allocation12 + $0x68] sm:$0xff]
    %v628 = vld [vmem:[#allocation12 + $0x70] sm:$0xff]
    %v629 = vld [vmem:[#allocation12 + $0x78] sm:$0xff]
    %v630 = vld [vmem:[#allocation12 + $0x80] sm:$0xff]
    %v631 = vld [vmem:[#allocation12 + $0x88] sm:$0xff]
    %v632 = vld [vmem:[#allocation12 + $0x90] sm:$0xff]
    %v633 = vld [vmem:[#allocation12 + $0x98] sm:$0xff]
    %v634 = vld [vmem:[#allocation12 + $0xa0] sm:$0xff]
    %v635 = vld [vmem:[#allocation12 + $0xa8] sm:$0xff]
    %v636 = vld [vmem:[#allocation12 + $0xb0] sm:$0xff]
    %v637 = vld [vmem:[#allocation12 + $0xb8] sm:$0xff]
    %v638 = vld [vmem:[#allocation12 + $0xc0] sm:$0xff]
    %v639 = vld [vmem:[#allocation12 + $0xc8] sm:$0xff]
    %v640 = vld [vmem:[#allocation12 + $0xd0] sm:$0xff]
    %v641 = vld [vmem:[#allocation12 + $0xd8] sm:$0xff]
    %v642 = vld [vmem:[#allocation12 + $0xe0] sm:$0xff]
    %v643 = vld [vmem:[#allocation12 + $0xe8] sm:$0xff]
    %v644 = vld [vmem:[#allocation12 + $0xf0] sm:$0xff]
    %v645 = vld [vmem:[#allocation12 + $0xf8] sm:$0xff]
    %646 = vmatprep.subr.mxu0 0.0
    %647 = vmatpush1.msra.mxu0 %v614
    %648 = vmatprep.subr.mxu0 0.0
    %649 = vmatpush1.msra.mxu0 %v615
    %650 = vmatprep.subr.mxu0 0.0
    %651 = vmatpush1.msra.mxu0 %v616
    %652 = vmatprep.subr.mxu0 0.0
    %653 = vmatpush1.msra.mxu0 %v617
    %654 = vmatprep.subr.mxu0 0.0
    %655 = vmatpush1.msra.mxu0 %v618
    %656 = vmatprep.subr.mxu0 0.0
    %657 = vmatpush1.msra.mxu0 %v619
    %658 = vmatprep.subr.mxu0 0.0
    %659 = vmatpush1.msra.mxu0 %v620
    %660 = vmatprep.subr.mxu0 0.0
    %661 = vmatpush1.msra.mxu0 %v621
    %662 = vmatprep.subr.mxu0 0.0
    %663 = vmatpush1.msra.mxu0 %v622
    %664 = vmatprep.subr.mxu0 0.0
    %665 = vmatpush1.msra.mxu0 %v623
    %666 = vmatprep.subr.mxu0 0.0
    %667 = vmatpush1.msra.mxu0 %v624
    %668 = vmatprep.subr.mxu0 0.0
    %669 = vmatpush1.msra.mxu0 %v625
    %670 = vmatprep.subr.mxu0 0.0
    %671 = vmatpush1.msra.mxu0 %v626
    %672 = vmatprep.subr.mxu0 0.0
    %673 = vmatpush1.msra.mxu0 %v627
    %674 = vmatprep.subr.mxu0 0.0
    %675 = vmatpush1.msra.mxu0 %v628
    %676 = vmatprep.subr.mxu0 0.0
    %677 = vmatpush1.msra.mxu0 %v629
    %678 = vmatprep.subr.mxu0 0.0
    %679 = vmatpush1.msra.mxu0 %v630
    %680 = vmatprep.subr.mxu0 0.0
    %681 = vmatpush1.msra.mxu0 %v631
    %682 = vmatprep.subr.mxu0 0.0
    %683 = vmatpush1.msra.mxu0 %v632
    %684 = vmatprep.subr.mxu0 0.0
    %685 = vmatpush1.msra.mxu0 %v633
    %686 = vmatprep.subr.mxu0 0.0
    %687 = vmatpush1.msra.mxu0 %v634
    %688 = vmatprep.subr.mxu0 0.0
    %689 = vmatpush1.msra.mxu0 %v635
    %690 = vmatprep.subr.mxu0 0.0
    %691 = vmatpush1.msra.mxu0 %v636
    %692 = vmatprep.subr.mxu0 0.0
    %693 = vmatpush1.msra.mxu0 %v637
    %694 = vmatprep.subr.mxu0 0.0
    %695 = vmatpush1.msra.mxu0 %v638
    %696 = vmatprep.subr.mxu0 0.0
    %697 = vmatpush1.msra.mxu0 %v639
    %698 = vmatprep.subr.mxu0 0.0
    %699 = vmatpush1.msra.mxu0 %v640
    %700 = vmatprep.subr.mxu0 0.0
    %701 = vmatpush1.msra.mxu0 %v641
    %702 = vmatprep.subr.mxu0 0.0
    %703 = vmatpush1.msra.mxu0 %v642
    %704 = vmatprep.subr.mxu0 0.0
    %705 = vmatpush1.msra.mxu0 %v643
    %706 = vmatprep.subr.mxu0 0.0
    %707 = vmatpush1.msra.mxu0 %v644
    %708 = vmatprep.subr.mxu0 0.0
    %709 = vmatpush1.msra.mxu0 %v645
    %710 = vmatprep.mubr.f32.mxu0 %v602
    %711 = vmatmul.mubr.f32.gmra.mrb[0].mxu0 %v610
    %v712 = vpop.f32.mrb[0].mxu0
    %v713 = vadd.f32 0.0, %v712
    %v714 = vpop.f32.mrb[0].mxu0
    %715 = vmatprep.mubr.f32.mxu0 %v603
    %716 = vmatmul.mubr.f32.gmra.mrb[0].mxu0 %v611
    %v717 = vpop.f32.mrb[0].mxu0
    %v718 = vadd.f32 0.0, %v717
    %v719 = vpop.f32.mrb[0].mxu0
    %720 = vmatprep.mubr.f32.mxu0 %v604
    %721 = vmatmul.mubr.f32.gmra.mrb[0].mxu0 %v612
    %v722 = vpop.f32.mrb[0].mxu0
    %v723 = vadd.f32 0.0, %v722
    %v724 = vpop.f32.mrb[0].mxu0
    %725 = vmatprep.mubr.f32.mxu0 %v605
    %726 = vmatmul.mubr.f32.gmra.mrb[0].mxu0 %v613
    %v727 = vpop.f32.mrb[0].mxu0
    %v728 = vadd.f32 0.0, %v727
    %v729 = vpop.f32.mrb[0].mxu0
    %730 = vdwg.mxu0
    %v731 = vld [vmem:[%s10] sm:$0x1]
    %v733 = vlaneseq
    %v734 = vshrl.u32 %v733, 7
    %v735 = vsub.s32 0, %v734
    %v736 = vrot.slane %v731, %v735
    %v738 = vadd.f32 %v713, %v736
    %v739 = vadd.f32 %v718, %v736
    %v740 = vadd.f32 %v723, %v736
    %v741 = vadd.f32 %v728, %v736
    %v742 = vmul.f32 %v738, 0.01
    %v743 = vmul.f32 %v739, 0.01
    %v744 = vmul.f32 %v740, 0.01
    %v745 = vmul.f32 %v741, 0.01
    %v746 = vmax.f32 %v738, %v742
    %v747 = vmax.f32 %v739, %v743
    %v748 = vmax.f32 %v740, %v744
    %v749 = vmax.f32 %v741, %v745
    %v750 = vadd.f32 %v746, %v458
    %v751 = vadd.f32 %v747, %v459
    %v752 = vadd.f32 %v748, %v460
    %v753 = vadd.f32 %v749, %v461
    %754 = vst [vmem:[#allocation2 + $0x8] sm:$0xff] %v750
    %755 = vst [vmem:[#allocation2 + $0x10] sm:$0xff] %v751
    %756 = vst [vmem:[#allocation2 + $0x20] sm:$0xff] %v752
    %757 = vst [vmem:[#allocation2 + $0x28] sm:$0xff] %v753
    %v758 = vld [vmem:[#allocation2 + $0x4] sm:$0xff]
    %v759 = vld [vmem:[#allocation2 + $0xc] sm:$0xff]
    %v760 = vld [vmem:[#allocation2 + $0x1c] sm:$0xff]
    %v761 = vld [vmem:[#allocation2 + $0x24] sm:$0xff]
    %v762 = vld [vmem:[#allocation14] sm:$0xff]
    %v763 = vld [vmem:[#allocation14 + $0x8] sm:$0xff]
    %v764 = vld [vmem:[#allocation14 + $0x10] sm:$0xff]
    %v765 = vld [vmem:[#allocation14 + $0x18] sm:$0xff]
    %v766 = vld [vmem:[#allocation14 + $0x20] sm:$0xff]
    %v767 = vld [vmem:[#allocation14 + $0x28] sm:$0xff]
    %v768 = vld [vmem:[#allocation14 + $0x30] sm:$0xff]
    %v769 = vld [vmem:[#allocation14 + $0x38] sm:$0xff]
    %v770 = vld [vmem:[#allocation14 + $0x40] sm:$0xff]
    %v771 = vld [vmem:[#allocation14 + $0x48] sm:$0xff]
    %v772 = vld [vmem:[#allocation14 + $0x50] sm:$0xff]
    %v773 = vld [vmem:[#allocation14 + $0x58] sm:$0xff]
    %v774 = vld [vmem:[#allocation14 + $0x60] sm:$0xff]
    %v775 = vld [vmem:[#allocation14 + $0x68] sm:$0xff]
    %v776 = vld [vmem:[#allocation14 + $0x70] sm:$0xff]
    %v777 = vld [vmem:[#allocation14 + $0x78] sm:$0xff]
    %v778 = vld [vmem:[#allocation14 + $0x80] sm:$0xff]
    %v779 = vld [vmem:[#allocation14 + $0x88] sm:$0xff]
    %v780 = vld [vmem:[#allocation14 + $0x90] sm:$0xff]
    %v781 = vld [vmem:[#allocation14 + $0x98] sm:$0xff]
    %v782 = vld [vmem:[#allocation14 + $0xa0] sm:$0xff]
    %v783 = vld [vmem:[#allocation14 + $0xa8] sm:$0xff]
    %v784 = vld [vmem:[#allocation14 + $0xb0] sm:$0xff]
    %v785 = vld [vmem:[#allocation14 + $0xb8] sm:$0xff]
    %v786 = vld [vmem:[#allocation14 + $0xc0] sm:$0xff]
    %v787 = vld [vmem:[#allocation14 + $0xc8] sm:$0xff]
    %v788 = vld [vmem:[#allocation14 + $0xd0] sm:$0xff]
    %v789 = vld [vmem:[#allocation14 + $0xd8] sm:$0xff]
    %v790 = vld [vmem:[#allocation14 + $0xe0] sm:$0xff]
    %v791 = vld [vmem:[#allocation14 + $0xe8] sm:$0xff]
    %v792 = vld [vmem:[#allocation14 + $0xf0] sm:$0xff]
    %v793 = vld [vmem:[#allocation14 + $0xf8] sm:$0xff]
    %794 = vmatprep.subr.mxu0 0.0
    %795 = vmatpush1.msra.mxu0 %v762
    %796 = vmatprep.subr.mxu0 0.0
    %797 = vmatpush1.msra.mxu0 %v763
    %798 = vmatprep.subr.mxu0 0.0
    %799 = vmatpush1.msra.mxu0 %v764
    %800 = vmatprep.subr.mxu0 0.0
    %801 = vmatpush1.msra.mxu0 %v765
    %802 = vmatprep.subr.mxu0 0.0
    %803 = vmatpush1.msra.mxu0 %v766
    %804 = vmatprep.subr.mxu0 0.0
    %805 = vmatpush1.msra.mxu0 %v767
    %806 = vmatprep.subr.mxu0 0.0
    %807 = vmatpush1.msra.mxu0 %v768
    %808 = vmatprep.subr.mxu0 0.0
    %809 = vmatpush1.msra.mxu0 %v769
    %810 = vmatprep.subr.mxu0 0.0
    %811 = vmatpush1.msra.mxu0 %v770
    %812 = vmatprep.subr.mxu0 0.0
    %813 = vmatpush1.msra.mxu0 %v771
    %814 = vmatprep.subr.mxu0 0.0
    %815 = vmatpush1.msra.mxu0 %v772
    %816 = vmatprep.subr.mxu0 0.0
    %817 = vmatpush1.msra.mxu0 %v773
    %818 = vmatprep.subr.mxu0 0.0
    %819 = vmatpush1.msra.mxu0 %v774
    %820 = vmatprep.subr.mxu0 0.0
    %821 = vmatpush1.msra.mxu0 %v775
    %822 = vmatprep.subr.mxu0 0.0
    %823 = vmatpush1.msra.mxu0 %v776
    %824 = vmatprep.subr.mxu0 0.0
    %825 = vmatpush1.msra.mxu0 %v777
    %826 = vmatprep.subr.mxu0 0.0
    %827 = vmatpush1.msra.mxu0 %v778
    %828 = vmatprep.subr.mxu0 0.0
    %829 = vmatpush1.msra.mxu0 %v779
    %830 = vmatprep.subr.mxu0 0.0
    %831 = vmatpush1.msra.mxu0 %v780
    %832 = vmatprep.subr.mxu0 0.0
    %833 = vmatpush1.msra.mxu0 %v781
    %834 = vmatprep.subr.mxu0 0.0
    %835 = vmatpush1.msra.mxu0 %v782
    %836 = vmatprep.subr.mxu0 0.0
    %837 = vmatpush1.msra.mxu0 %v783
    %838 = vmatprep.subr.mxu0 0.0
    %839 = vmatpush1.msra.mxu0 %v784
    %840 = vmatprep.subr.mxu0 0.0
    %841 = vmatpush1.msra.mxu0 %v785
    %842 = vmatprep.subr.mxu0 0.0
    %843 = vmatpush1.msra.mxu0 %v786
    %844 = vmatprep.subr.mxu0 0.0
    %845 = vmatpush1.msra.mxu0 %v787
    %846 = vmatprep.subr.mxu0 0.0
    %847 = vmatpush1.msra.mxu0 %v788
    %848 = vmatprep.subr.mxu0 0.0
    %849 = vmatpush1.msra.mxu0 %v789
    %850 = vmatprep.subr.mxu0 0.0
    %851 = vmatpush1.msra.mxu0 %v790
    %852 = vmatprep.subr.mxu0 0.0
    %853 = vmatpush1.msra.mxu0 %v791
    %854 = vmatprep.subr.mxu0 0.0
    %855 = vmatpush1.msra.mxu0 %v792
    %856 = vmatprep.subr.mxu0 0.0
    %857 = vmatpush1.msra.mxu0 %v793
    %858 = vmatprep.mubr.f32.mxu0 %v750
    %859 = vmatmul.mubr.f32.gmra.mrb[0].mxu0 %v758
    %v860 = vpop.f32.mrb[0].mxu0
    %v861 = vadd.f32 0.0, %v860
    %v862 = vpop.f32.mrb[0].mxu0
    %863 = vmatprep.mubr.f32.mxu0 %v751
    %864 = vmatmul.mubr.f32.gmra.mrb[0].mxu0 %v759
    %v865 = vpop.f32.mrb[0].mxu0
    %v866 = vadd.f32 0.0, %v865
    %v867 = vpop.f32.mrb[0].mxu0
    %868 = vmatprep.mubr.f32.mxu0 %v752
    %869 = vmatmul.mubr.f32.gmra.mrb[0].mxu0 %v760
    %v870 = vpop.f32.mrb[0].mxu0
    %v871 = vadd.f32 0.0, %v870
    %v872 = vpop.f32.mrb[0].mxu0
    %873 = vmatprep.mubr.f32.mxu0 %v753
    %874 = vmatmul.mubr.f32.gmra.mrb[0].mxu0 %v761
    %v875 = vpop.f32.mrb[0].mxu0
    %v876 = vadd.f32 0.0, %v875
    %v877 = vpop.f32.mrb[0].mxu0
    %878 = vdwg.mxu0
    %v879 = vld [vmem:[%s12] sm:$0x1]
    %v881 = vlaneseq
    %v882 = vshrl.u32 %v881, 7
    %v883 = vsub.s32 0, %v882
    %v884 = vrot.slane %v879, %v883
    %v886 = vadd.f32 %v861, %v884
    %v887 = vadd.f32 %v866, %v884
    %v888 = vadd.f32 %v871, %v884
    %v889 = vadd.f32 %v876, %v884
    %v890 = vmul.f32 %v886, 0.01
    %v891 = vmul.f32 %v887, 0.01
    %v892 = vmul.f32 %v888, 0.01
    %v893 = vmul.f32 %v889, 0.01
    %v894 = vmax.f32 %v886, %v890
    %v895 = vmax.f32 %v887, %v891
    %v896 = vmax.f32 %v888, %v892
    %v897 = vmax.f32 %v889, %v893
    %898 = vst [vmem:[#allocation2 + $0x8] sm:$0xff] %v894
    %899 = vst [vmem:[#allocation2 + $0x10] sm:$0xff] %v895
    %900 = vst [vmem:[#allocation2 + $0x20] sm:$0xff] %v896
    %901 = vst [vmem:[#allocation2 + $0x28] sm:$0xff] %v897
    %v902 = vld [vmem:[#allocation2 + $0x4] sm:$0xff]
    %v903 = vld [vmem:[#allocation2 + $0xc] sm:$0xff]
    %v904 = vld [vmem:[#allocation2 + $0x1c] sm:$0xff]
    %v905 = vld [vmem:[#allocation2 + $0x24] sm:$0xff]
    %v906 = vld [vmem:[#allocation15] sm:$0xff]
    %v907 = vld [vmem:[#allocation15 + $0x8] sm:$0xff]
    %v908 = vld [vmem:[#allocation15 + $0x10] sm:$0xff]
    %v909 = vld [vmem:[#allocation15 + $0x18] sm:$0xff]
    %v910 = vld [vmem:[#allocation15 + $0x20] sm:$0xff]
    %v911 = vld [vmem:[#allocation15 + $0x28] sm:$0xff]
    %v912 = vld [vmem:[#allocation15 + $0x30] sm:$0xff]
    %v913 = vld [vmem:[#allocation15 + $0x38] sm:$0xff]
    %v914 = vld [vmem:[#allocation15 + $0x40] sm:$0xff]
    %v915 = vld [vmem:[#allocation15 + $0x48] sm:$0xff]
    %v916 = vld [vmem:[#allocation15 + $0x50] sm:$0xff]
    %v917 = vld [vmem:[#allocation15 + $0x58] sm:$0xff]
    %v918 = vld [vmem:[#allocation15 + $0x60] sm:$0xff]
    %v919 = vld [vmem:[#allocation15 + $0x68] sm:$0xff]
    %v920 = vld [vmem:[#allocation15 + $0x70] sm:$0xff]
    %v921 = vld [vmem:[#allocation15 + $0x78] sm:$0xff]
    %v922 = vld [vmem:[#allocation15 + $0x80] sm:$0xff]
    %v923 = vld [vmem:[#allocation15 + $0x88] sm:$0xff]
    %v924 = vld [vmem:[#allocation15 + $0x90] sm:$0xff]
    %v925 = vld [vmem:[#allocation15 + $0x98] sm:$0xff]
    %v926 = vld [vmem:[#allocation15 + $0xa0] sm:$0xff]
    %v927 = vld [vmem:[#allocation15 + $0xa8] sm:$0xff]
    %v928 = vld [vmem:[#allocation15 + $0xb0] sm:$0xff]
    %v929 = vld [vmem:[#allocation15 + $0xb8] sm:$0xff]
    %v930 = vld [vmem:[#allocation15 + $0xc0] sm:$0xff]
    %v931 = vld [vmem:[#allocation15 + $0xc8] sm:$0xff]
    %v932 = vld [vmem:[#allocation15 + $0xd0] sm:$0xff]
    %v933 = vld [vmem:[#allocation15 + $0xd8] sm:$0xff]
    %v934 = vld [vmem:[#allocation15 + $0xe0] sm:$0xff]
    %v935 = vld [vmem:[#allocation15 + $0xe8] sm:$0xff]
    %v936 = vld [vmem:[#allocation15 + $0xf0] sm:$0xff]
    %v937 = vld [vmem:[#allocation15 + $0xf8] sm:$0xff]
    %938 = vmatprep.subr.mxu0 0.0
    %939 = vmatpush1.msra.mxu0 %v906
    %940 = vmatprep.subr.mxu0 0.0
    %941 = vmatpush1.msra.mxu0 %v907
    %942 = vmatprep.subr.mxu0 0.0
    %943 = vmatpush1.msra.mxu0 %v908
    %944 = vmatprep.subr.mxu0 0.0
    %945 = vmatpush1.msra.mxu0 %v909
    %946 = vmatprep.subr.mxu0 0.0
    %947 = vmatpush1.msra.mxu0 %v910
    %948 = vmatprep.subr.mxu0 0.0
    %949 = vmatpush1.msra.mxu0 %v911
    %950 = vmatprep.subr.mxu0 0.0
    %951 = vmatpush1.msra.mxu0 %v912
    %952 = vmatprep.subr.mxu0 0.0
    %953 = vmatpush1.msra.mxu0 %v913
    %954 = vmatprep.subr.mxu0 0.0
    %955 = vmatpush1.msra.mxu0 %v914
    %956 = vmatprep.subr.mxu0 0.0
    %957 = vmatpush1.msra.mxu0 %v915
    %958 = vmatprep.subr.mxu0 0.0
    %959 = vmatpush1.msra.mxu0 %v916
    %960 = vmatprep.subr.mxu0 0.0
    %961 = vmatpush1.msra.mxu0 %v917
    %962 = vmatprep.subr.mxu0 0.0
    %963 = vmatpush1.msra.mxu0 %v918
    %964 = vmatprep.subr.mxu0 0.0
    %965 = vmatpush1.msra.mxu0 %v919
    %966 = vmatprep.subr.mxu0 0.0
    %967 = vmatpush1.msra.mxu0 %v920
    %968 = vmatprep.subr.mxu0 0.0
    %969 = vmatpush1.msra.mxu0 %v921
    %970 = vmatprep.subr.mxu0 0.0
    %971 = vmatpush1.msra.mxu0 %v922
    %972 = vmatprep.subr.mxu0 0.0
    %973 = vmatpush1.msra.mxu0 %v923
    %974 = vmatprep.subr.mxu0 0.0
    %975 = vmatpush1.msra.mxu0 %v924
    %976 = vmatprep.subr.mxu0 0.0
    %977 = vmatpush1.msra.mxu0 %v925
    %978 = vmatprep.subr.mxu0 0.0
    %979 = vmatpush1.msra.mxu0 %v926
    %980 = vmatprep.subr.mxu0 0.0
    %981 = vmatpush1.msra.mxu0 %v927
    %982 = vmatprep.subr.mxu0 0.0
    %983 = vmatpush1.msra.mxu0 %v928
    %984 = vmatprep.subr.mxu0 0.0
    %985 = vmatpush1.msra.mxu0 %v929
    %986 = vmatprep.subr.mxu0 0.0
    %987 = vmatpush1.msra.mxu0 %v930
    %988 = vmatprep.subr.mxu0 0.0
    %989 = vmatpush1.msra.mxu0 %v931
    %990 = vmatprep.subr.mxu0 0.0
    %991 = vmatpush1.msra.mxu0 %v932
    %992 = vmatprep.subr.mxu0 0.0
    %993 = vmatpush1.msra.mxu0 %v933
    %994 = vmatprep.subr.mxu0 0.0
    %995 = vmatpush1.msra.mxu0 %v934
    %996 = vmatprep.subr.mxu0 0.0
    %997 = vmatpush1.msra.mxu0 %v935
    %998 = vmatprep.subr.mxu0 0.0
    %999 = vmatpush1.msra.mxu0 %v936
    %1000 = vmatprep.subr.mxu0 0.0
    %1001 = vmatpush1.msra.mxu0 %v937
    %1002 = vmatprep.mubr.f32.mxu0 %v894
    %1003 = vmatmul.mubr.f32.gmra.mrb[0].mxu0 %v902
    %v1004 = vpop.f32.mrb[0].mxu0
    %v1005 = vadd.f32 0.0, %v1004
    %v1006 = vpop.f32.mrb[0].mxu0
    %1007 = vmatprep.mubr.f32.mxu0 %v895
    %1008 = vmatmul.mubr.f32.gmra.mrb[0].mxu0 %v903
    %v1009 = vpop.f32.mrb[0].mxu0
    %v1010 = vadd.f32 0.0, %v1009
    %v1011 = vpop.f32.mrb[0].mxu0
    %1012 = vmatprep.mubr.f32.mxu0 %v896
    %1013 = vmatmul.mubr.f32.gmra.mrb[0].mxu0 %v904
    %v1014 = vpop.f32.mrb[0].mxu0
    %v1015 = vadd.f32 0.0, %v1014
    %v1016 = vpop.f32.mrb[0].mxu0
    %1017 = vmatprep.mubr.f32.mxu0 %v897
    %1018 = vmatmul.mubr.f32.gmra.mrb[0].mxu0 %v905
    %v1019 = vpop.f32.mrb[0].mxu0
    %v1020 = vadd.f32 0.0, %v1019
    %v1021 = vpop.f32.mrb[0].mxu0
    %1022 = vdwg.mxu0
    %v1023 = vld [vmem:[%s14] sm:$0x1]
    %v1025 = vlaneseq
    %v1026 = vshrl.u32 %v1025, 7
    %v1027 = vsub.s32 0, %v1026
    %v1028 = vrot.slane %v1023, %v1027
    %v1030 = vadd.f32 %v1005, %v1028
    %v1031 = vadd.f32 %v1010, %v1028
    %v1032 = vadd.f32 %v1015, %v1028
    %v1033 = vadd.f32 %v1020, %v1028
    %v1034 = vmul.f32 %v1030, 0.01
    %v1035 = vmul.f32 %v1031, 0.01
    %v1036 = vmul.f32 %v1032, 0.01
    %v1037 = vmul.f32 %v1033, 0.01
    %v1038 = vmax.f32 %v1030, %v1034
    %v1039 = vmax.f32 %v1031, %v1035
    %v1040 = vmax.f32 %v1032, %v1036
    %v1041 = vmax.f32 %v1033, %v1037
    %v1042 = vadd.f32 %v1038, %v750
    %v1043 = vadd.f32 %v1039, %v751
    %v1044 = vadd.f32 %v1040, %v752
    %v1045 = vadd.f32 %v1041, %v753
    %1046 = vst [vmem:[#allocation2 + $0x8] sm:$0xff] %v1042
    %1047 = vst [vmem:[#allocation2 + $0x10] sm:$0xff] %v1043
    %1048 = vst [vmem:[#allocation2 + $0x20] sm:$0xff] %v1044
    %1049 = vst [vmem:[#allocation2 + $0x28] sm:$0xff] %v1045
    %v1050 = vld [vmem:[#allocation2] sm:$0xff]
    %v1051 = vld [vmem:[#allocation2 + $0x8] sm:$0xff]
    %v1052 = vld [vmem:[#allocation2 + $0x18] sm:$0xff]
    %v1053 = vld [vmem:[#allocation2 + $0x20] sm:$0xff]
    %v1054 = vld [vmem:[#allocation17] sm:$0xff]
    %v1055 = vld [vmem:[#allocation17 + $0x8] sm:$0xff]
    %v1056 = vld [vmem:[#allocation17 + $0x10] sm:$0xff]
    %v1057 = vld [vmem:[#allocation17 + $0x18] sm:$0xff]
    %v1058 = vld [vmem:[#allocation17 + $0x20] sm:$0xff]
    %v1059 = vld [vmem:[#allocation17 + $0x28] sm:$0xff]
    %v1060 = vld [vmem:[#allocation17 + $0x30] sm:$0xff]
    %v1061 = vld [vmem:[#allocation17 + $0x38] sm:$0xff]
    %v1062 = vld [vmem:[#allocation17 + $0x40] sm:$0xff]
    %v1063 = vld [vmem:[#allocation17 + $0x48] sm:$0xff]
    %v1064 = vld [vmem:[#allocation17 + $0x50] sm:$0xff]
    %v1065 = vld [vmem:[#allocation17 + $0x58] sm:$0xff]
    %v1066 = vld [vmem:[#allocation17 + $0x60] sm:$0xff]
    %v1067 = vld [vmem:[#allocation17 + $0x68] sm:$0xff]
    %v1068 = vld [vmem:[#allocation17 + $0x70] sm:$0xff]
    %v1069 = vld [vmem:[#allocation17 + $0x78] sm:$0xff]
    %v1070 = vld [vmem:[#allocation17 + $0x80] sm:$0xff]
    %v1071 = vld [vmem:[#allocation17 + $0x88] sm:$0xff]
    %v1072 = vld [vmem:[#allocation17 + $0x90] sm:$0xff]
    %v1073 = vld [vmem:[#allocation17 + $0x98] sm:$0xff]
    %v1074 = vld [vmem:[#allocation17 + $0xa0] sm:$0xff]
    %v1075 = vld [vmem:[#allocation17 + $0xa8] sm:$0xff]
    %v1076 = vld [vmem:[#allocation17 + $0xb0] sm:$0xff]
    %v1077 = vld [vmem:[#allocation17 + $0xb8] sm:$0xff]
    %v1078 = vld [vmem:[#allocation17 + $0xc0] sm:$0xff]
    %v1079 = vld [vmem:[#allocation17 + $0xc8] sm:$0xff]
    %v1080 = vld [vmem:[#allocation17 + $0xd0] sm:$0xff]
    %v1081 = vld [vmem:[#allocation17 + $0xd8] sm:$0xff]
    %v1082 = vld [vmem:[#allocation17 + $0xe0] sm:$0xff]
    %v1083 = vld [vmem:[#allocation17 + $0xe8] sm:$0xff]
    %v1084 = vld [vmem:[#allocation17 + $0xf0] sm:$0xff]
    %v1085 = vld [vmem:[#allocation17 + $0xf8] sm:$0xff]
    %1086 = vmatprep.subr.mxu0 0.0
    %1087 = vmatpush1.msra.mxu0 %v1054
    %1088 = vmatprep.subr.mxu0 0.0
    %1089 = vmatpush1.msra.mxu0 %v1055
    %1090 = vmatprep.subr.mxu0 0.0
    %1091 = vmatpush1.msra.mxu0 %v1056
    %1092 = vmatprep.subr.mxu0 0.0
    %1093 = vmatpush1.msra.mxu0 %v1057
    %1094 = vmatprep.subr.mxu0 0.0
    %1095 = vmatpush1.msra.mxu0 %v1058
    %1096 = vmatprep.subr.mxu0 0.0
    %1097 = vmatpush1.msra.mxu0 %v1059
    %1098 = vmatprep.subr.mxu0 0.0
    %1099 = vmatpush1.msra.mxu0 %v1060
    %1100 = vmatprep.subr.mxu0 0.0
    %1101 = vmatpush1.msra.mxu0 %v1061
    %1102 = vmatprep.subr.mxu0 0.0
    %1103 = vmatpush1.msra.mxu0 %v1062
    %1104 = vmatprep.subr.mxu0 0.0
    %1105 = vmatpush1.msra.mxu0 %v1063
    %1106 = vmatprep.subr.mxu0 0.0
    %1107 = vmatpush1.msra.mxu0 %v1064
    %1108 = vmatprep.subr.mxu0 0.0
    %1109 = vmatpush1.msra.mxu0 %v1065
    %1110 = vmatprep.subr.mxu0 0.0
    %1111 = vmatpush1.msra.mxu0 %v1066
    %1112 = vmatprep.subr.mxu0 0.0
    %1113 = vmatpush1.msra.mxu0 %v1067
    %1114 = vmatprep.subr.mxu0 0.0
    %1115 = vmatpush1.msra.mxu0 %v1068
    %1116 = vmatprep.subr.mxu0 0.0
    %1117 = vmatpush1.msra.mxu0 %v1069
    %1118 = vmatprep.subr.mxu0 0.0
    %1119 = vmatpush1.msra.mxu0 %v1070
    %1120 = vmatprep.subr.mxu0 0.0
    %1121 = vmatpush1.msra.mxu0 %v1071
    %1122 = vmatprep.subr.mxu0 0.0
    %1123 = vmatpush1.msra.mxu0 %v1072
    %1124 = vmatprep.subr.mxu0 0.0
    %1125 = vmatpush1.msra.mxu0 %v1073
    %1126 = vmatprep.subr.mxu0 0.0
    %1127 = vmatpush1.msra.mxu0 %v1074
    %1128 = vmatprep.subr.mxu0 0.0
    %1129 = vmatpush1.msra.mxu0 %v1075
    %1130 = vmatprep.subr.mxu0 0.0
    %1131 = vmatpush1.msra.mxu0 %v1076
    %1132 = vmatprep.subr.mxu0 0.0
    %1133 = vmatpush1.msra.mxu0 %v1077
    %1134 = vmatprep.subr.mxu0 0.0
    %1135 = vmatpush1.msra.mxu0 %v1078
    %1136 = vmatprep.subr.mxu0 0.0
    %1137 = vmatpush1.msra.mxu0 %v1079
    %1138 = vmatprep.subr.mxu0 0.0
    %1139 = vmatpush1.msra.mxu0 %v1080
    %1140 = vmatprep.subr.mxu0 0.0
    %1141 = vmatpush1.msra.mxu0 %v1081
    %1142 = vmatprep.subr.mxu0 0.0
    %1143 = vmatpush1.msra.mxu0 %v1082
    %1144 = vmatprep.subr.mxu0 0.0
    %1145 = vmatpush1.msra.mxu0 %v1083
    %1146 = vmatprep.subr.mxu0 0.0
    %1147 = vmatpush1.msra.mxu0 %v1084
    %1148 = vmatprep.subr.mxu0 0.0
    %1149 = vmatpush1.msra.mxu0 %v1085
    %1150 = vmatprep.mubr.f32.mxu0 %v1042
    %1151 = vmatmul.mubr.f32.gmra.mrb[0].mxu0 %v1050
    %v1152 = vpop.f32.mrb[0].mxu0
    %v1153 = vadd.f32 0.0, %v1152
    %v1154 = vpop.f32.mrb[0].mxu0
    %1155 = vmatprep.mubr.f32.mxu0 %v1043
    %1156 = vmatmul.mubr.f32.gmra.mrb[0].mxu0 %v1051
    %v1157 = vpop.f32.mrb[0].mxu0
    %v1158 = vadd.f32 0.0, %v1157
    %v1159 = vpop.f32.mrb[0].mxu0
    %1160 = vmatprep.mubr.f32.mxu0 %v1044
    %1161 = vmatmul.mubr.f32.gmra.mrb[0].mxu0 %v1052
    %v1162 = vpop.f32.mrb[0].mxu0
    %v1163 = vadd.f32 0.0, %v1162
    %v1164 = vpop.f32.mrb[0].mxu0
    %1165 = vmatprep.mubr.f32.mxu0 %v1045
    %1166 = vmatmul.mubr.f32.gmra.mrb[0].mxu0 %v1053
    %v1167 = vpop.f32.mrb[0].mxu0
    %v1168 = vadd.f32 0.0, %v1167
    %v1169 = vpop.f32.mrb[0].mxu0
    %1170 = vdwg.mxu0
    %v1171 = vld [vmem:[%s16] sm:$0x1]
    %v1173 = vlaneseq
    %v1174 = vshrl.u32 %v1173, 7
    %v1175 = vsub.s32 0, %v1174
    %v1176 = vrot.slane %v1171, %v1175
    %v1178 = vadd.f32 %v1153, %v1176
    %v1179 = vadd.f32 %v1158, %v1176
    %v1180 = vadd.f32 %v1163, %v1176
    %v1181 = vadd.f32 %v1168, %v1176
    %v1182 = vmul.f32 %v1178, 0.01
    %v1183 = vmul.f32 %v1179, 0.01
    %v1184 = vmul.f32 %v1180, 0.01
    %v1185 = vmul.f32 %v1181, 0.01
    %v1186 = vmax.f32 %v1178, %v1182
    %v1187 = vmax.f32 %v1179, %v1183
    %v1188 = vmax.f32 %v1180, %v1184
    %v1189 = vmax.f32 %v1181, %v1185
    %1190 = vst [vmem:[#allocation2 + $0x8] sm:$0xff] %v1186
    %1191 = vst [vmem:[#allocation2 + $0x10] sm:$0xff] %v1187
    %1192 = vst [vmem:[#allocation2 + $0x20] sm:$0xff] %v1188
    %1193 = vst [vmem:[#allocation2 + $0x28] sm:$0xff] %v1189
    %v1194 = vld [vmem:[#allocation2] sm:$0xff]
    %v1195 = vld [vmem:[#allocation2 + $0x8] sm:$0xff]
    %v1196 = vld [vmem:[#allocation2 + $0x18] sm:$0xff]
    %v1197 = vld [vmem:[#allocation2 + $0x20] sm:$0xff]
    %v1198 = vld [vmem:[#allocation18] sm:$0xff]
    %v1199 = vld [vmem:[#allocation18 + $0x8] sm:$0xff]
    %v1200 = vld [vmem:[#allocation18 + $0x10] sm:$0xff]
    %v1201 = vld [vmem:[#allocation18 + $0x18] sm:$0xff]
    %v1202 = vld [vmem:[#allocation18 + $0x20] sm:$0xff]
    %v1203 = vld [vmem:[#allocation18 + $0x28] sm:$0xff]
    %v1204 = vld [vmem:[#allocation18 + $0x30] sm:$0xff]
    %v1205 = vld [vmem:[#allocation18 + $0x38] sm:$0xff]
    %v1206 = vld [vmem:[#allocation18 + $0x40] sm:$0xff]
    %v1207 = vld [vmem:[#allocation18 + $0x48] sm:$0xff]
    %v1208 = vld [vmem:[#allocation18 + $0x50] sm:$0xff]
    %v1209 = vld [vmem:[#allocation18 + $0x58] sm:$0xff]
    %v1210 = vld [vmem:[#allocation18 + $0x60] sm:$0xff]
    %v1211 = vld [vmem:[#allocation18 + $0x68] sm:$0xff]
    %v1212 = vld [vmem:[#allocation18 + $0x70] sm:$0xff]
    %v1213 = vld [vmem:[#allocation18 + $0x78] sm:$0xff]
    %v1214 = vld [vmem:[#allocation18 + $0x80] sm:$0xff]
    %v1215 = vld [vmem:[#allocation18 + $0x88] sm:$0xff]
    %v1216 = vld [vmem:[#allocation18 + $0x90] sm:$0xff]
    %v1217 = vld [vmem:[#allocation18 + $0x98] sm:$0xff]
    %v1218 = vld [vmem:[#allocation18 + $0xa0] sm:$0xff]
    %v1219 = vld [vmem:[#allocation18 + $0xa8] sm:$0xff]
    %v1220 = vld [vmem:[#allocation18 + $0xb0] sm:$0xff]
    %v1221 = vld [vmem:[#allocation18 + $0xb8] sm:$0xff]
    %v1222 = vld [vmem:[#allocation18 + $0xc0] sm:$0xff]
    %v1223 = vld [vmem:[#allocation18 + $0xc8] sm:$0xff]
    %v1224 = vld [vmem:[#allocation18 + $0xd0] sm:$0xff]
    %v1225 = vld [vmem:[#allocation18 + $0xd8] sm:$0xff]
    %v1226 = vld [vmem:[#allocation18 + $0xe0] sm:$0xff]
    %v1227 = vld [vmem:[#allocation18 + $0xe8] sm:$0xff]
    %v1228 = vld [vmem:[#allocation18 + $0xf0] sm:$0xff]
    %v1229 = vld [vmem:[#allocation18 + $0xf8] sm:$0xff]
    %1230 = vmatprep.subr.mxu0 0.0
    %1231 = vmatpush1.msra.mxu0 %v1198
    %1232 = vmatprep.subr.mxu0 0.0
    %1233 = vmatpush1.msra.mxu0 %v1199
    %1234 = vmatprep.subr.mxu0 0.0
    %1235 = vmatpush1.msra.mxu0 %v1200
    %1236 = vmatprep.subr.mxu0 0.0
    %1237 = vmatpush1.msra.mxu0 %v1201
    %1238 = vmatprep.subr.mxu0 0.0
    %1239 = vmatpush1.msra.mxu0 %v1202
    %1240 = vmatprep.subr.mxu0 0.0
    %1241 = vmatpush1.msra.mxu0 %v1203
    %1242 = vmatprep.subr.mxu0 0.0
    %1243 = vmatpush1.msra.mxu0 %v1204
    %1244 = vmatprep.subr.mxu0 0.0
    %1245 = vmatpush1.msra.mxu0 %v1205
    %1246 = vmatprep.subr.mxu0 0.0
    %1247 = vmatpush1.msra.mxu0 %v1206
    %1248 = vmatprep.subr.mxu0 0.0
    %1249 = vmatpush1.msra.mxu0 %v1207
    %1250 = vmatprep.subr.mxu0 0.0
    %1251 = vmatpush1.msra.mxu0 %v1208
    %1252 = vmatprep.subr.mxu0 0.0
    %1253 = vmatpush1.msra.mxu0 %v1209
    %1254 = vmatprep.subr.mxu0 0.0
    %1255 = vmatpush1.msra.mxu0 %v1210
    %1256 = vmatprep.subr.mxu0 0.0
    %1257 = vmatpush1.msra.mxu0 %v1211
    %1258 = vmatprep.subr.mxu0 0.0
    %1259 = vmatpush1.msra.mxu0 %v1212
    %1260 = vmatprep.subr.mxu0 0.0
    %1261 = vmatpush1.msra.mxu0 %v1213
    %1262 = vmatprep.subr.mxu0 0.0
    %1263 = vmatpush1.msra.mxu0 %v1214
    %1264 = vmatprep.subr.mxu0 0.0
    %1265 = vmatpush1.msra.mxu0 %v1215
    %1266 = vmatprep.subr.mxu0 0.0
    %1267 = vmatpush1.msra.mxu0 %v1216
    %1268 = vmatprep.subr.mxu0 0.0
    %1269 = vmatpush1.msra.mxu0 %v1217
    %1270 = vmatprep.subr.mxu0 0.0
    %1271 = vmatpush1.msra.mxu0 %v1218
    %1272 = vmatprep.subr.mxu0 0.0
    %1273 = vmatpush1.msra.mxu0 %v1219
    %1274 = vmatprep.subr.mxu0 0.0
    %1275 = vmatpush1.msra.mxu0 %v1220
    %1276 = vmatprep.subr.mxu0 0.0
    %1277 = vmatpush1.msra.mxu0 %v1221
    %1278 = vmatprep.subr.mxu0 0.0
    %1279 = vmatpush1.msra.mxu0 %v1222
    %1280 = vmatprep.subr.mxu0 0.0
    %1281 = vmatpush1.msra.mxu0 %v1223
    %1282 = vmatprep.subr.mxu0 0.0
    %1283 = vmatpush1.msra.mxu0 %v1224
    %1284 = vmatprep.subr.mxu0 0.0
    %1285 = vmatpush1.msra.mxu0 %v1225
    %1286 = vmatprep.subr.mxu0 0.0
    %1287 = vmatpush1.msra.mxu0 %v1226
    %1288 = vmatprep.subr.mxu0 0.0
    %1289 = vmatpush1.msra.mxu0 %v1227
    %1290 = vmatprep.subr.mxu0 0.0
    %1291 = vmatpush1.msra.mxu0 %v1228
    %1292 = vmatprep.subr.mxu0 0.0
    %1293 = vmatpush1.msra.mxu0 %v1229
    %1294 = vmatprep.mubr.f32.mxu0 %v1186
    %1295 = vmatmul.mubr.f32.gmra.mrb[0].mxu0 %v1194
    %v1296 = vpop.f32.mrb[0].mxu0
    %v1297 = vadd.f32 0.0, %v1296
    %v1298 = vpop.f32.mrb[0].mxu0
    %1299 = vmatprep.mubr.f32.mxu0 %v1187
    %1300 = vmatmul.mubr.f32.gmra.mrb[0].mxu0 %v1195
    %v1301 = vpop.f32.mrb[0].mxu0
    %v1302 = vadd.f32 0.0, %v1301
    %v1303 = vpop.f32.mrb[0].mxu0
    %1304 = vmatprep.mubr.f32.mxu0 %v1188
    %1305 = vmatmul.mubr.f32.gmra.mrb[0].mxu0 %v1196
    %v1306 = vpop.f32.mrb[0].mxu0
    %v1307 = vadd.f32 0.0, %v1306
    %v1308 = vpop.f32.mrb[0].mxu0
    %1309 = vmatprep.mubr.f32.mxu0 %v1189
    %1310 = vmatmul.mubr.f32.gmra.mrb[0].mxu0 %v1197
    %v1311 = vpop.f32.mrb[0].mxu0
    %v1312 = vadd.f32 0.0, %v1311
    %v1313 = vpop.f32.mrb[0].mxu0
    %1314 = vdwg.mxu0
    %v1315 = vld [vmem:[%s18] sm:$0x1]
    %v1317 = vlaneseq
    %v1318 = vshrl.u32 %v1317, 7
    %v1319 = vsub.s32 0, %v1318
    %v1320 = vrot.slane %v1315, %v1319
    %v1322 = vadd.f32 %v1297, %v1320
    %v1323 = vadd.f32 %v1302, %v1320
    %v1324 = vadd.f32 %v1307, %v1320
    %v1325 = vadd.f32 %v1312, %v1320
    %v1326 = vmul.f32 %v1322, 0.01
    %v1327 = vmul.f32 %v1323, 0.01
    %v1328 = vmul.f32 %v1324, 0.01
    %v1329 = vmul.f32 %v1325, 0.01
    %v1330 = vmax.f32 %v1322, %v1326
    %v1331 = vmax.f32 %v1323, %v1327
    %v1332 = vmax.f32 %v1324, %v1328
    %v1333 = vmax.f32 %v1325, %v1329
    %v1334 = vadd.f32 %v1330, %v1042
    %v1335 = vadd.f32 %v1331, %v1043
    %v1336 = vadd.f32 %v1332, %v1044
    %v1337 = vadd.f32 %v1333, %v1045
    %1338 = vst [vmem:[#allocation20] sm:$0xff] %v1334
    %1339 = vst [vmem:[#allocation20 + $0x8] sm:$0xff] %v1335
    %1340 = vst [vmem:[#allocation20 + $0x10] sm:$0xff] %v1336
    %1341 = vst [vmem:[#allocation20 + $0x18] sm:$0xff] %v1337
    // Predicated region
    $region118: #{tpu_custom_call.1} parent=1 // pred_check
      _
    $region119: #{tpu_custom_call.1} parent=1 // pred_check_branch
      %1343 = sbr.rel (0) target = $region121
    $region120: #{tpu_custom_call.1} parent=1 // pred_region
      %s1345 = ssub.s32 512, 512
      %1346 = vsyncadd [#allocation5], %s1345
      %s1347 = sshll.u32 [#allocation20], 4
      %s1348 = int_to_ptr.vmem [resolvable:$true] %s1347
      %1353 = dma.vmem_to_hbm [thread:$0]  %s1348, 512, %s19, [#allocation5], 128, 128, 8
    $region121: #{tpu_custom_call.1} parent=1 // pred_fallthru
      _
    // Predicated region
    $region122: #{tpu_custom_call.1} parent=1 // pred_check
      _
    $region123: #{tpu_custom_call.1} parent=1 // pred_check_branch
      %1355 = sbr.rel (0) target = $region125
    $region124: #{tpu_custom_call.1} parent=1 // pred_region
      %1356 = dma.done [#allocation5], 512
    $region125: #{tpu_custom_call.1} parent=1 // pred_fallthru
      _
    %1357 = vsyncpa [#allocation4], 1
    %1358 = vsyncpa [#allocation7], 1
    %1359 = vsyncpa [#allocation10], 1
    %1360 = vsyncpa [#allocation13], 1
    %1361 = vsyncpa [#allocation16], 1
    %1362 = vsyncpa [#allocation19], 1
    %1363 = vsyncpa [#allocation5], 1

</llo_original>
